<compile_context>
chip_gen: v6e
topology: v6e:2x2x1
jax: 0.10.0
libtpu: 0.0.40
codegen_flags: <defaults>
</compile_context>

<pallas_src>
import functools
import math

import jax
import jax.numpy as jnp
from jax.experimental import pallas as pl
from jax.experimental.pallas import tpu as pltpu


def _round_up(n: int, m: int) -> int:
    return ((n + m - 1) // m) * m


def _pad2(a, rows, cols):
    return jnp.pad(a, ((0, rows - a.shape[0]), (0, cols - a.shape[1])))


def barenet_kernel(ha_ref, oa_ref,                   # SMEM (1,1) scalars
                   x_ref, hw_t_ref, hp_ref, hb_ref,  # VMEM tiles
                   ow_t_ref, op_ref, ob_ref,
                   out_ref, *, compute_dtype):
    # Fused weight construction in f32, then cast for the MXU.  Kept in-kernel
    # (not pre-built in the wrapper) so weights are read from HBM once and the
    # VPU add hides under MXU slack.
    w1 = (hw_t_ref[...] + ha_ref[0, 0] * hp_ref[...]).astype(compute_dtype)
    w2 = (ow_t_ref[...] + oa_ref[0, 0] * op_ref[...]).astype(compute_dtype)

    x = x_ref[...].astype(compute_dtype)
    y = jnp.dot(x, w1, preferred_element_type=jnp.float32)
    y = jnp.maximum(y + hb_ref[...], 0.0)            # bias + ReLU in f32

    out = jnp.dot(y.astype(compute_dtype), w2, preferred_element_type=jnp.float32)
    out_ref[...] = (out + ob_ref[...]).astype(out_ref.dtype)


def barenet_forward(x, params, *, compute_dtype=jnp.bfloat16, batch_tile=256):
    """x: [B, input_dim].  params: dict of BareNet parameters (PyTorch layout)."""
    B, input_dim = x.shape
    hidden_dim = params["hidden_w"].shape[0]
    output_dim = params["output_b"].shape[0]
    assert params["hidden_w"].shape == (hidden_dim, input_dim)
    assert output_dim == input_dim, (
        "BareNet.forward adds output_b (len output_dim) to a [B, input_dim] "
        "result; broadcasting requires output_dim == input_dim.")

    f32 = jnp.float32
    # ---- layout plumbing: lane/sublane-aligned padded shapes -----------------
    ID = _round_up(input_dim, 128)
    HD = _round_up(hidden_dim, 128)
    OD = _round_up(output_dim, 128)
    TB = _round_up(min(batch_tile, _round_up(B, 8)), 8)   # batch tile (sublane)
    BP = _round_up(B, TB)
    n_tiles = BP // TB

    hw_t = _pad2(params["hidden_w"].T.astype(f32), ID, HD)   # [ID, HD]
    hp = _pad2(params["hidden_p"].astype(f32), ID, HD)       # [ID, HD]
    ow_t = _pad2(params["output_w"].T.astype(f32), HD, OD)   # [HD, OD]
    op = _pad2(params["output_p"].astype(f32), HD, OD)       # [HD, OD]
    hb = _pad2(params["hidden_b"].reshape(1, -1).astype(f32), 1, HD)
    ob = _pad2(params["output_b"].reshape(1, -1).astype(f32), 1, OD)
    ha = params["hidden_a"].reshape(1, 1).astype(f32)
    oa = params["output_a"].reshape(1, 1).astype(f32)
    xp = _pad2(x.astype(f32), BP, ID)

    # ---- VMEM budget (resident weights + double-buffered x/out tiles) -------
    f32b = 4
    resident = (2 * ID * HD + 2 * HD * OD + HD + OD) * f32b
    streamed = 2 * (TB * ID + TB * OD) * f32b
    live = TB * HD * f32b
    vmem_limit = int(min(64 << 20, max(32 << 20,
                                       2 * (resident + streamed + live) + (8 << 20))))

    cost = pl.CostEstimate(
        flops=2 * BP * ID * HD + 2 * BP * HD * OD,
        transcendentals=0,
        bytes_accessed=f32b * (BP * ID + BP * OD + 2 * ID * HD + 2 * HD * OD
                               + HD + OD + 2),
    )

    smem = pltpu.MemorySpace.SMEM
    grid_spec = pltpu.PrefetchScalarGridSpec(
        num_scalar_prefetch=0,
        grid=(n_tiles,),
        in_specs=[
            pl.BlockSpec((1, 1), lambda i: (0, 0), memory_space=smem),  # hidden_a
            pl.BlockSpec((1, 1), lambda i: (0, 0), memory_space=smem),  # output_a
            pl.BlockSpec((TB, ID), lambda i: (i, 0)),                   # x tile
            pl.BlockSpec((ID, HD), lambda i: (0, 0)),                   # hidden_w.T
            pl.BlockSpec((ID, HD), lambda i: (0, 0)),                   # hidden_p
            pl.BlockSpec((1, HD), lambda i: (0, 0)),                    # hidden_b
            pl.BlockSpec((HD, OD), lambda i: (0, 0)),                   # output_w.T
            pl.BlockSpec((HD, OD), lambda i: (0, 0)),                   # output_p
            pl.BlockSpec((1, OD), lambda i: (0, 0)),                    # output_b
        ],
        out_specs=pl.BlockSpec((TB, OD), lambda i: (i, 0)),
    )

    out_padded = pl.pallas_call(
        functools.partial(barenet_kernel, compute_dtype=compute_dtype),
        out_shape=jax.ShapeDtypeStruct((BP, OD), jnp.float32),
        grid_spec=grid_spec,
        compiler_params=pltpu.CompilerParams(
            dimension_semantics=("parallel",),
            vmem_limit_bytes=vmem_limit,
        ),
        cost_estimate=cost,
    )(ha, oa, xp, hw_t, hp, hb, ow_t, op, ob)

    return out_padded[:B, :output_dim]


def init_barenet_params(key, input_dim, hidden_dim, output_dim):
    """Deterministic init matching BareNet.__init__ semantics."""
    k1, k2, k3, k4 = jax.random.split(key, 4)
    stdv_h = 1.0 / math.sqrt(input_dim)
    stdv_o = 1.0 / math.sqrt(hidden_dim)
    return {
        "hidden_w": jax.random.uniform(k1, (hidden_dim, input_dim),
                                       minval=-stdv_h, maxval=stdv_h, dtype=jnp.float32),
        "hidden_b": jax.random.uniform(k2, (hidden_dim,),
                                       minval=-stdv_h, maxval=stdv_h, dtype=jnp.float32),
        "hidden_a": jnp.zeros((1,), jnp.float32),
        "hidden_p": jnp.zeros((input_dim, hidden_dim), jnp.float32),
        "output_w": jax.random.uniform(k3, (input_dim, hidden_dim),
                                       minval=-stdv_o, maxval=stdv_o, dtype=jnp.float32),
        "output_b": jax.random.uniform(k4, (output_dim,),
                                       minval=-stdv_o, maxval=stdv_o, dtype=jnp.float32),
        "output_a": jnp.zeros((1,), jnp.float32),
        "output_p": jnp.zeros((hidden_dim, input_dim), jnp.float32),
    }


def barenet_ref(x, p, compute_dtype=jnp.float32):
    """Pure-JAX reference; compute_dtype mirrors the kernel's MXU input dtype."""
    f32 = jnp.float32
    w1 = (p["hidden_w"].T.astype(f32) + p["hidden_a"] * p["hidden_p"]).astype(compute_dtype)
    w2 = (p["output_w"].T.astype(f32) + p["output_a"] * p["output_p"]).astype(compute_dtype)
    y = jnp.dot(x.astype(compute_dtype), w1, preferred_element_type=f32) + p["hidden_b"]
    y = jnp.maximum(y, 0.0)
    return jnp.dot(y.astype(compute_dtype), w2, preferred_element_type=f32) + p["output_b"]


if __name__ == "__main__":
    root = jax.random.PRNGKey(0)
    kx1, kp1, khp1, kop1, kx2, kp2, khp2, kop2 = jax.random.split(root, 8)

    # --- Test 1: lane-aligned shapes; exercises the batch grid (2 tiles). ----
    B, input_dim, hidden_dim = 384, 128, 256
    output_dim = input_dim  # forward's bias-add broadcast implies this
    params = init_barenet_params(kp1, input_dim, hidden_dim, output_dim)
    params["hidden_a"] = jnp.array([0.1], jnp.float32)
    params["output_a"] = jnp.array([-0.2], jnp.float32)
    params["hidden_p"] = jax.random.normal(khp1, (input_dim, hidden_dim), jnp.float32)
    params["output_p"] = jax.random.normal(kop1, (hidden_dim, input_dim), jnp.float32)
    x = jax.random.normal(kx1, (B, input_dim), jnp.float32)

    out_f32 = jax.block_until_ready(barenet_forward(x, params, compute_dtype=jnp.float32))
    ref_f32 = barenet_ref(x, params, compute_dtype=jnp.float32)
    assert out_f32.shape == (B, output_dim)
    assert jnp.allclose(out_f32, ref_f32, atol=2e-4, rtol=2e-4), "f32 mismatch vs reference"

    out_bf16 = jax.block_until_ready(barenet_forward(x, params, compute_dtype=jnp.bfloat16))
    ref_bf16 = barenet_ref(x, params, compute_dtype=jnp.bfloat16)
    assert jnp.allclose(out_bf16, ref_bf16, atol=5e-3, rtol=5e-3), "bf16 mismatch vs reference"

    # --- Test 2: non-aligned dims & batch (exercises the padding path). ------
    B2, id2, hd2 = 50, 96, 72
    params2 = init_barenet_params(kp2, id2, hd2, id2)
    params2["hidden_a"] = jnp.array([0.3], jnp.float32)
    params2["output_a"] = jnp.array([0.05], jnp.float32)
    params2["hidden_p"] = jax.random.normal(khp2, (id2, hd2), jnp.float32)
    params2["output_p"] = jax.random.normal(kop2, (hd2, id2), jnp.float32)
    x2 = jax.random.normal(kx2, (B2, id2), jnp.float32)

    out2 = jax.block_until_ready(barenet_forward(x2, params2, compute_dtype=jnp.float32))
    ref2 = barenet_ref(x2, params2, compute_dtype=jnp.float32)
    assert out2.shape == (B2, id2)
    assert jnp.allclose(out2, ref2, atol=2e-4, rtol=2e-4), "padded-path mismatch vs reference"

    print("KERNEL_OK")
</pallas_src>

<mosaic_0001>
module attributes {stable_mosaic.version = 11 : i64} {
  func.func @barenet_kernel(%arg0: i32, %arg1: memref<1x1xf32, #tpu.memory_space<smem>>, %arg2: memref<1x1xf32, #tpu.memory_space<smem>>, %arg3: memref<256x128xf32, #tpu.memory_space<vmem>>, %arg4: memref<128x256xf32, #tpu.memory_space<vmem>>, %arg5: memref<128x256xf32, #tpu.memory_space<vmem>>, %arg6: memref<1x256xf32, #tpu.memory_space<vmem>>, %arg7: memref<256x128xf32, #tpu.memory_space<vmem>>, %arg8: memref<256x128xf32, #tpu.memory_space<vmem>>, %arg9: memref<1x128xf32, #tpu.memory_space<vmem>>, %arg10: memref<256x128xf32, #tpu.memory_space<vmem>>) attributes {dimension_semantics = [#tpu.dimension_semantics<parallel>], iteration_bounds = array<i64: 2>, scalar_prefetch = 0 : i64, scratch_operands = 0 : i64, tpu.core_type = #tpu.core_type<tc>, window_params = [{transform_indices = @transform_0, window_bounds = array<i64: 1, 1>}, {transform_indices = @transform_1, window_bounds = array<i64: 1, 1>}, {transform_indices = @transform_2, window_bounds = array<i64: 256, 128>}, {pipeline_mode = #tpu.pipeline_mode<synchronous>, transform_indices = @transform_3, window_bounds = array<i64: 128, 256>}, {pipeline_mode = #tpu.pipeline_mode<synchronous>, transform_indices = @transform_4, window_bounds = array<i64: 128, 256>}, {pipeline_mode = #tpu.pipeline_mode<synchronous>, transform_indices = @transform_5, window_bounds = array<i64: 1, 256>}, {pipeline_mode = #tpu.pipeline_mode<synchronous>, transform_indices = @transform_6, window_bounds = array<i64: 256, 128>}, {pipeline_mode = #tpu.pipeline_mode<synchronous>, transform_indices = @transform_7, window_bounds = array<i64: 256, 128>}, {pipeline_mode = #tpu.pipeline_mode<synchronous>, transform_indices = @transform_8, window_bounds = array<i64: 1, 128>}, {transform_indices = @transform_9, window_bounds = array<i64: 256, 128>}]} {
    %c0 = arith.constant 0 : index
    %c0_0 = arith.constant 0 : index
    %0 = vector.load %arg4[%c0, %c0_0] : memref<128x256xf32, #tpu.memory_space<vmem>>, vector<128x256xf32>
    %c0_1 = arith.constant 0 : index
    %c0_2 = arith.constant 0 : index
    %1 = memref.load %arg1[%c0_1, %c0_2] : memref<1x1xf32, #tpu.memory_space<smem>>
    %c0_3 = arith.constant 0 : index
    %c0_4 = arith.constant 0 : index
    %2 = vector.load %arg5[%c0_3, %c0_4] : memref<128x256xf32, #tpu.memory_space<vmem>>, vector<128x256xf32>
    %3 = vector.broadcast %1 : f32 to vector<128x256xf32>
    %4 = arith.mulf %3, %2 : vector<128x256xf32>
    %5 = arith.addf %0, %4 : vector<128x256xf32>
    %c0_5 = arith.constant 0 : index
    %c0_6 = arith.constant 0 : index
    %6 = vector.load %arg7[%c0_5, %c0_6] : memref<256x128xf32, #tpu.memory_space<vmem>>, vector<256x128xf32>
    %c0_7 = arith.constant 0 : index
    %c0_8 = arith.constant 0 : index
    %7 = memref.load %arg2[%c0_7, %c0_8] : memref<1x1xf32, #tpu.memory_space<smem>>
    %c0_9 = arith.constant 0 : index
    %c0_10 = arith.constant 0 : index
    %8 = vector.load %arg8[%c0_9, %c0_10] : memref<256x128xf32, #tpu.memory_space<vmem>>, vector<256x128xf32>
    %9 = vector.broadcast %7 : f32 to vector<256x128xf32>
    %10 = arith.mulf %9, %8 : vector<256x128xf32>
    %11 = arith.addf %6, %10 : vector<256x128xf32>
    %c0_11 = arith.constant 0 : index
    %c0_12 = arith.constant 0 : index
    %12 = vector.load %arg3[%c0_11, %c0_12] : memref<256x128xf32, #tpu.memory_space<vmem>>, vector<256x128xf32>
    %cst = arith.constant dense<0.000000e+00> : vector<256x256xf32>
    %13 = tpu.matmul %12, %5, %cst {dimension_numbers = #tpu.dot_dimension_numbers<[1], [0], [0], [1], [0, 0, 1, 1], [], []>} : vector<256x128xf32>, vector<128x256xf32>, vector<256x256xf32> -> vector<256x256xf32>
    %c0_13 = arith.constant 0 : index
    %c0_14 = arith.constant 0 : index
    %14 = vector.load %arg6[%c0_13, %c0_14] : memref<1x256xf32, #tpu.memory_space<vmem>>, vector<1x256xf32>
    %15 = vector.broadcast %14 : vector<1x256xf32> to vector<256x256xf32>
    %16 = arith.addf %13, %15 : vector<256x256xf32>
    %cst_15 = arith.constant 0.000000e+00 : f32
    %17 = vector.broadcast %cst_15 : f32 to vector<256x256xf32>
    %18 = arith.maximumf %16, %17 : vector<256x256xf32>
    %cst_16 = arith.constant dense<0.000000e+00> : vector<256x128xf32>
    %19 = tpu.matmul %18, %11, %cst_16 {dimension_numbers = #tpu.dot_dimension_numbers<[1], [0], [0], [1], [0, 0, 1, 1], [], []>} : vector<256x256xf32>, vector<256x128xf32>, vector<256x128xf32> -> vector<256x128xf32>
    %c0_17 = arith.constant 0 : index
    %c0_18 = arith.constant 0 : index
    %20 = vector.load %arg9[%c0_17, %c0_18] : memref<1x128xf32, #tpu.memory_space<vmem>>, vector<1x128xf32>
    %21 = vector.broadcast %20 : vector<1x128xf32> to vector<256x128xf32>
    %22 = arith.addf %19, %21 : vector<256x128xf32>
    %c0_19 = arith.constant 0 : index
    %c0_20 = arith.constant 0 : index
    %23 = vector.load %arg10[%c0_19, %c0_20] : memref<256x128xf32, #tpu.memory_space<vmem>>, vector<256x128xf32>
    tpu.vector_store %arg10[%c0_19, %c0_20], %22 {strides = array<i32>} : memref<256x128xf32, #tpu.memory_space<vmem>>, vector<256x128xf32>,
    return
  }
  func.func @transform_0(%arg0: i32) -> (i32, i32) {
    %c0_i32 = arith.constant 0 : i32
    %c0_i32_0 = arith.constant 0 : i32
    %c0_i32_1 = arith.constant 0 : i32
    return %c0_i32, %c0_i32_0 : i32, i32
  }
  func.func @transform_1(%arg0: i32) -> (i32, i32) {
    %c0_i32 = arith.constant 0 : i32
    %c0_i32_0 = arith.constant 0 : i32
    %c0_i32_1 = arith.constant 0 : i32
    return %c0_i32, %c0_i32_0 : i32, i32
  }
  func.func @transform_2(%arg0: i32) -> (i32, i32) {
    %c0_i32 = arith.constant 0 : i32
    %c0_i32_0 = arith.constant 0 : i32
    return %arg0, %c0_i32 : i32, i32
  }
  func.func @transform_3(%arg0: i32) -> (i32, i32) {
    %c0_i32 = arith.constant 0 : i32
    %c0_i32_0 = arith.constant 0 : i32
    %c0_i32_1 = arith.constant 0 : i32
    return %c0_i32, %c0_i32_0 : i32, i32
  }
  func.func @transform_4(%arg0: i32) -> (i32, i32) {
    %c0_i32 = arith.constant 0 : i32
    %c0_i32_0 = arith.constant 0 : i32
    %c0_i32_1 = arith.constant 0 : i32
    return %c0_i32, %c0_i32_0 : i32, i32
  }
  func.func @transform_5(%arg0: i32) -> (i32, i32) {
    %c0_i32 = arith.constant 0 : i32
    %c0_i32_0 = arith.constant 0 : i32
    %c0_i32_1 = arith.constant 0 : i32
    return %c0_i32, %c0_i32_0 : i32, i32
  }
  func.func @transform_6(%arg0: i32) -> (i32, i32) {
    %c0_i32 = arith.constant 0 : i32
    %c0_i32_0 = arith.constant 0 : i32
    %c0_i32_1 = arith.constant 0 : i32
    return %c0_i32, %c0_i32_0 : i32, i32
  }
  func.func @transform_7(%arg0: i32) -> (i32, i32) {
    %c0_i32 = arith.constant 0 : i32
    %c0_i32_0 = arith.constant 0 : i32
    %c0_i32_1 = arith.constant 0 : i32
    return %c0_i32, %c0_i32_0 : i32, i32
  }
  func.func @transform_8(%arg0: i32) -> (i32, i32) {
    %c0_i32 = arith.constant 0 : i32
    %c0_i32_0 = arith.constant 0 : i32
    %c0_i32_1 = arith.constant 0 : i32
    return %c0_i32, %c0_i32_0 : i32, i32
  }
  func.func @transform_9(%arg0: i32) -> (i32, i32) {
    %c0_i32 = arith.constant 0 : i32
    %c0_i32_0 = arith.constant 0 : i32
    return %arg0, %c0_i32 : i32, i32
  }
}

</mosaic_0001>

<llo_original>
// kernel: tpu_custom_call.1
$region0: #{tpu_custom_call.1}
  #allocation0 [shape = 'u32[]', space=smem, size = 0x4, offset = 0x4, fixed_abs, tag = 'smem constant byte address 0x4 - core index']
  #allocation1 [shape = 'u32[144,128]{1,0:T(1,128)}', space=vmem, size = 0x12000, scoped, tag = 'internal scratch']
  #allocation2 [shape = 'f32[1,1]{1,0:T(1,128)S(6)}', space=smem, size = 0x200, scoped, tag = 'scoped memory for tpu_custom_call.1']
  #allocation3 [shape = 'f32[1,1]{1,0:T(1,128)S(6)}', space=smem, size = 0x200, scoped, tag = 'scoped memory for tpu_custom_call.1']
  %s0 = inlined_call_operand.<no memory space> [shape: f32[1,1], index: 0, kind: input, shape index: {}]
  %s1 = inlined_call_operand.<no memory space> [shape: f32[1,1], index: 1, kind: input, shape index: {}]
  %s2 = inlined_call_operand.hbm [shape: f32[512,128], index: 2, kind: input, shape index: {}]
  %s3 = inlined_call_operand.hbm [shape: f32[128,256], index: 3, kind: input, shape index: {}]
  %s4 = inlined_call_operand.hbm [shape: f32[128,256], index: 4, kind: input, shape index: {}]
  %s5 = inlined_call_operand.vmem [shape: f32[1,256], index: 5, kind: input, shape index: {}]
  %s6 = inlined_call_operand.hbm [shape: f32[256,128], index: 6, kind: input, shape index: {}]
  %s7 = inlined_call_operand.hbm [shape: f32[256,128], index: 7, kind: input, shape index: {}]
  %s8 = inlined_call_operand.vmem [shape: f32[1,128], index: 8, kind: input, shape index: {}]
  %s9 = inlined_call_operand.hbm [shape: f32[512,128], index: 9, kind: output, shape index: {}]
  %s10 = sld [smem:[#allocation0]]
  $region89: #{tpu_custom_call.1} parent=0
    _
  %s12 = ssub.s32 1, %s10
  %s13 = scalar_select 0, %s12, %s10
  %14 = sst [smem:[#allocation2]] %s0
  %15 = sst [smem:[#allocation3]] %s1
  $region1: #{tpu_custom_call.1} parent=0
    #allocation4 [shape = 'u8[262144]{0}', space=vmem, size = 0x40000, scoped, tag = 'input window, operand 2']
    #allocation5 [shape = 's32[2]{0}', space=sflag, size = 0x8, scoped, tag = 'scoped memory for tpu_custom_call.1']
    #allocation6 [shape = 's32[2]{0}', space=sflag, size = 0x8, scoped, tag = 'scoped memory for tpu_custom_call.1']
    #allocation7 [shape = 'u8[131072]{0}', space=vmem, size = 0x20000, scoped, tag = 'input window, operand 3, single buffered']
    #allocation8 [shape = 's32[1]{0}', space=sflag, size = 0x4, scoped, tag = 'scoped memory for tpu_custom_call.1']
    #allocation9 [shape = 'u8[131072]{0}', space=vmem, size = 0x20000, scoped, tag = 'input window, operand 4, single buffered']
    #allocation10 [shape = 'u8[131072]{0}', space=vmem, size = 0x20000, scoped, tag = 'input window, operand 6, single buffered']
    #allocation11 [shape = 's32[1]{0}', space=sflag, size = 0x4, scoped, tag = 'scoped memory for tpu_custom_call.1']
    #allocation12 [shape = 'u8[131072]{0}', space=vmem, size = 0x20000, scoped, tag = 'input window, operand 7, single buffered']
    #allocation13 [shape = 'u8[262144]{0}', space=vmem, size = 0x40000, scoped, tag = 'output window, operand 0']
    %16 = vsyncpa [#allocation5], 0
    %s17 = scalar_lea.sflag [#allocation5], 1
    %18 = vsyncpa %s17, 0
    %19 = vsyncpa [#allocation8], 0
    %20 = vsyncpa [#allocation11], 0
    %21 = vsyncpa [#allocation6], 0
    %s22 = scalar_lea.sflag [#allocation6], 1
    %23 = vsyncpa %s22, 0
    loop: start=0, step=1, limit=4
    $region2: #{tpu_custom_call.1} parent=1 // loop_pre_header
      _
    $region3: #{tpu_custom_call.1} parent=1 // loop_header
      %s25 = sphi 0, %s29
      %p26 = scmp.ge.s32.totalorder %s25, 4
      %s33 = sphi 0, %s33
      %s35 = sphi 0, %s33
      %s36 = sphi 0, %s35
      %s50 = sphi 0, %s36
      %s54 = sphi 0, %s54
      %s56 = sphi 0, %s54
      %s57 = sphi 0, %s56
      %s71 = sphi 0, %s57
      %s77 = sphi 0, %s79
      %s80 = sphi 0, %s77
      %s81 = sphi 0, %s80
      %s97 = sphi 0, %s81
      %s101 = sphi 0, %s101
      %s103 = sphi 0, %s101
      %s104 = sphi 0, %s103
      %s118 = sphi 0, %s104
      %s122 = sphi 0, %s122
      %s124 = sphi 0, %s122
      %s125 = sphi 0, %s124
      %s139 = sphi 0, %s125
      %s143 = sphi 0, %s143
      %s145 = sphi 0, %s143
      %s146 = sphi 0, %s145
      %s160 = sphi 0, %s146
      %s164 = sphi 0, %s164
      %s166 = sphi 0, %s164
      %s167 = sphi 0, %s166
      %s181 = sphi 0, %s167
      %s185 = sphi 0, %s185
      %s187 = sphi 0, %s185
      %s188 = sphi 0, %s187
      %s202 = sphi 0, %s188
      %s206 = sphi 0, %s206
      %s208 = sphi 0, %s206
      %s209 = sphi 0, %s208
      %s223 = sphi 0, %s209
      %s229 = sphi 0, %s231
      %s232 = sphi 0, %s229
      %s233 = sphi 0, %s232
      %s249 = sphi 0, %s233
    $region4: #{tpu_custom_call.1} parent=1 // loop_header_branch
      %28 = sbr.rel (%p26) target = $region8
    $region5: #{tpu_custom_call.1} parent=1 // loop_body
      %s30 = ssub.s32 %s25, 1
      %s31 = ssub.s32 %s25, 2
      %s32 = sadd.s32 %s25, 1
      %s34 = sadd.s32 %s33, 1
      %p37 = scmp.eq.s32.totalorder %s25, 1
      %p38 = scmp.ne.s32.totalorder %s33, %s35
      %p39 = scmp.eq.s32.totalorder %s25, 0
      %p40 = por %p38, %p39
      %p41 = scmp.ne.s32.totalorder %s33, %s35
      %p42 = scmp.eq.s32.totalorder %s30, 1
      %p43 = por %p41, %p42
      %p44 = scmp.ne.s32.totalorder %s35, %s36
      %p45 = scmp.eq.s32.totalorder %s30, 0
      %p46 = por %p44, %p45
      %p47 = scmp.ne.s32.totalorder %s35, %s36
      %p48 = scmp.eq.s32.totalorder %s31, 1
      %p49 = por %p47, %p48
      %p51 = scmp.ne.s32.totalorder %s36, %s50
      %p52 = scmp.eq.s32.totalorder %s31, 0
      %p53 = por %p51, %p52
      %s55 = sadd.s32 %s54, 1
      %p58 = scmp.eq.s32.totalorder %s25, 1
      %p59 = scmp.ne.s32.totalorder %s54, %s56
      %p60 = scmp.eq.s32.totalorder %s25, 0
      %p61 = por %p59, %p60
      %p62 = scmp.ne.s32.totalorder %s54, %s56
      %p63 = scmp.eq.s32.totalorder %s30, 1
      %p64 = por %p62, %p63
      %p65 = scmp.ne.s32.totalorder %s56, %s57
      %p66 = scmp.eq.s32.totalorder %s30, 0
      %p67 = por %p65, %p66
      %p68 = scmp.ne.s32.totalorder %s56, %s57
      %p69 = scmp.eq.s32.totalorder %s31, 1
      %p70 = por %p68, %p69
      %p72 = scmp.ne.s32.totalorder %s57, %s71
      %p73 = scmp.eq.s32.totalorder %s31, 0
      %p74 = por %p72, %p73
      %s75 = ssub.s32 %s25, %s32
      %p76 = scmp.eq.s32.totalorder %s75, 0
      %s78 = sadd.s32 %s77, 1
      %s79 = scalar_select %p76, %s77, %s78
      %p82 = pneg %p76
      %p83 = scmp.eq.s32.totalorder %s25, 1
      %p84 = por %p82, %p83
      %p85 = scmp.ne.s32.totalorder %s77, %s80
      %p86 = scmp.eq.s32.totalorder %s25, 0
      %p87 = por %p85, %p86
      %p88 = scmp.ne.s32.totalorder %s77, %s80
      %p89 = scmp.eq.s32.totalorder %s30, 1
      %p90 = por %p88, %p89
      %p91 = scmp.ne.s32.totalorder %s80, %s81
      %p92 = scmp.eq.s32.totalorder %s30, 0
      %p93 = por %p91, %p92
      %p94 = scmp.ne.s32.totalorder %s80, %s81
      %p95 = scmp.eq.s32.totalorder %s31, 1
      %p96 = por %p94, %p95
      %p98 = scmp.ne.s32.totalorder %s81, %s97
      %p99 = scmp.eq.s32.totalorder %s31, 0
      %p100 = por %p98, %p99
      %s102 = sadd.s32 %s101, 1
      %p105 = scmp.eq.s32.totalorder %s25, 1
      %p106 = scmp.ne.s32.totalorder %s101, %s103
      %p107 = scmp.eq.s32.totalorder %s25, 0
      %p108 = por %p106, %p107
      %p109 = scmp.ne.s32.totalorder %s101, %s103
      %p110 = scmp.eq.s32.totalorder %s30, 1
      %p111 = por %p109, %p110
      %p112 = scmp.ne.s32.totalorder %s103, %s104
      %p113 = scmp.eq.s32.totalorder %s30, 0
      %p114 = por %p112, %p113
      %p115 = scmp.ne.s32.totalorder %s103, %s104
      %p116 = scmp.eq.s32.totalorder %s31, 1
      %p117 = por %p115, %p116
      %p119 = scmp.ne.s32.totalorder %s104, %s118
      %p120 = scmp.eq.s32.totalorder %s31, 0
      %p121 = por %p119, %p120
      %s123 = sadd.s32 %s122, 1
      %p126 = scmp.eq.s32.totalorder %s25, 1
      %p127 = scmp.ne.s32.totalorder %s122, %s124
      %p128 = scmp.eq.s32.totalorder %s25, 0
      %p129 = por %p127, %p128
      %p130 = scmp.ne.s32.totalorder %s122, %s124
      %p131 = scmp.eq.s32.totalorder %s30, 1
      %p132 = por %p130, %p131
      %p133 = scmp.ne.s32.totalorder %s124, %s125
      %p134 = scmp.eq.s32.totalorder %s30, 0
      %p135 = por %p133, %p134
      %p136 = scmp.ne.s32.totalorder %s124, %s125
      %p137 = scmp.eq.s32.totalorder %s31, 1
      %p138 = por %p136, %p137
      %p140 = scmp.ne.s32.totalorder %s125, %s139
      %p141 = scmp.eq.s32.totalorder %s31, 0
      %p142 = por %p140, %p141
      %s144 = sadd.s32 %s143, 1
      %p147 = scmp.eq.s32.totalorder %s25, 1
      %p148 = scmp.ne.s32.totalorder %s143, %s145
      %p149 = scmp.eq.s32.totalorder %s25, 0
      %p150 = por %p148, %p149
      %p151 = scmp.ne.s32.totalorder %s143, %s145
      %p152 = scmp.eq.s32.totalorder %s30, 1
      %p153 = por %p151, %p152
      %p154 = scmp.ne.s32.totalorder %s145, %s146
      %p155 = scmp.eq.s32.totalorder %s30, 0
      %p156 = por %p154, %p155
      %p157 = scmp.ne.s32.totalorder %s145, %s146
      %p158 = scmp.eq.s32.totalorder %s31, 1
      %p159 = por %p157, %p158
      %p161 = scmp.ne.s32.totalorder %s146, %s160
      %p162 = scmp.eq.s32.totalorder %s31, 0
      %p163 = por %p161, %p162
      %s165 = sadd.s32 %s164, 1
      %p168 = scmp.eq.s32.totalorder %s25, 1
      %p169 = scmp.ne.s32.totalorder %s164, %s166
      %p170 = scmp.eq.s32.totalorder %s25, 0
      %p171 = por %p169, %p170
      %p172 = scmp.ne.s32.totalorder %s164, %s166
      %p173 = scmp.eq.s32.totalorder %s30, 1
      %p174 = por %p172, %p173
      %p175 = scmp.ne.s32.totalorder %s166, %s167
      %p176 = scmp.eq.s32.totalorder %s30, 0
      %p177 = por %p175, %p176
      %p178 = scmp.ne.s32.totalorder %s166, %s167
      %p179 = scmp.eq.s32.totalorder %s31, 1
      %p180 = por %p178, %p179
      %p182 = scmp.ne.s32.totalorder %s167, %s181
      %p183 = scmp.eq.s32.totalorder %s31, 0
      %p184 = por %p182, %p183
      %s186 = sadd.s32 %s185, 1
      %p189 = scmp.eq.s32.totalorder %s25, 1
      %p190 = scmp.ne.s32.totalorder %s185, %s187
      %p191 = scmp.eq.s32.totalorder %s25, 0
      %p192 = por %p190, %p191
      %p193 = scmp.ne.s32.totalorder %s185, %s187
      %p194 = scmp.eq.s32.totalorder %s30, 1
      %p195 = por %p193, %p194
      %p196 = scmp.ne.s32.totalorder %s187, %s188
      %p197 = scmp.eq.s32.totalorder %s30, 0
      %p198 = por %p196, %p197
      %p199 = scmp.ne.s32.totalorder %s187, %s188
      %p200 = scmp.eq.s32.totalorder %s31, 1
      %p201 = por %p199, %p200
      %p203 = scmp.ne.s32.totalorder %s188, %s202
      %p204 = scmp.eq.s32.totalorder %s31, 0
      %p205 = por %p203, %p204
      %s207 = sadd.s32 %s206, 1
      %p210 = scmp.eq.s32.totalorder %s25, 1
      %p211 = scmp.ne.s32.totalorder %s206, %s208
      %p212 = scmp.eq.s32.totalorder %s25, 0
      %p213 = por %p211, %p212
      %p214 = scmp.ne.s32.totalorder %s206, %s208
      %p215 = scmp.eq.s32.totalorder %s30, 1
      %p216 = por %p214, %p215
      %p217 = scmp.ne.s32.totalorder %s208, %s209
      %p218 = scmp.eq.s32.totalorder %s30, 0
      %p219 = por %p217, %p218
      %p220 = scmp.ne.s32.totalorder %s208, %s209
      %p221 = scmp.eq.s32.totalorder %s31, 1
      %p222 = por %p220, %p221
      %p224 = scmp.ne.s32.totalorder %s209, %s223
      %p225 = scmp.eq.s32.totalorder %s31, 0
      %p226 = por %p224, %p225
      %s227 = ssub.s32 %s25, %s32
      %p228 = scmp.eq.s32.totalorder %s227, 0
      %s230 = sadd.s32 %s229, 1
      %s231 = scalar_select %p228, %s229, %s230
      %p234 = pneg %p228
      %p235 = scmp.eq.s32.totalorder %s25, 1
      %p236 = por %p234, %p235
      %p237 = scmp.ne.s32.totalorder %s229, %s232
      %p238 = scmp.eq.s32.totalorder %s25, 0
      %p239 = por %p237, %p238
      %p240 = scmp.ne.s32.totalorder %s229, %s232
      %p241 = scmp.eq.s32.totalorder %s30, 1
      %p242 = por %p240, %p241
      %p243 = scmp.ne.s32.totalorder %s232, %s233
      %p244 = scmp.eq.s32.totalorder %s30, 0
      %p245 = por %p243, %p244
      %p246 = scmp.ne.s32.totalorder %s232, %s233
      %p247 = scmp.eq.s32.totalorder %s31, 1
      %p248 = por %p246, %p247
      %p250 = scmp.ne.s32.totalorder %s233, %s249
      %p251 = scmp.eq.s32.totalorder %s31, 0
      %p252 = por %p250, %p251
      %p253 = scmp.le.s32.totalorder 1, %s25
      %p254 = scmp.lt.s32.totalorder %s25, 3
      %p255 = pnand %p253, %p254
      %p256 = pneg %p255
      // Predicated region
      $region9: #{tpu_custom_call.1} parent=5 // pred_check
        _
      $region10: #{tpu_custom_call.1} parent=5 // pred_check_branch
        %258 = sbr.rel (%p255) target = $region12
      $region11: #{tpu_custom_call.1} parent=5 // pred_region
        %s259 = ssub.s32 %s25, 1
        // Predicated region
        $region13: #{tpu_custom_call.1} parent=11 // pred_check
          %p260 = pneg %p46
        $region14: #{tpu_custom_call.1} parent=11 // pred_check_branch
          %262 = sbr.rel (%p260) target = $region16
        $region15: #{tpu_custom_call.1} parent=11 // pred_region
          _
        $region16: #{tpu_custom_call.1} parent=11 // pred_fallthru
          _
        // Predicated region
        $region17: #{tpu_custom_call.1} parent=11 // pred_check
          %p263 = pneg %p67
        $region18: #{tpu_custom_call.1} parent=11 // pred_check_branch
          %265 = sbr.rel (%p263) target = $region20
        $region19: #{tpu_custom_call.1} parent=11 // pred_region
          _
        $region20: #{tpu_custom_call.1} parent=11 // pred_fallthru
          _
        // Predicated region
        $region21: #{tpu_custom_call.1} parent=11 // pred_check
          %p266 = pneg %p114
        $region22: #{tpu_custom_call.1} parent=11 // pred_check_branch
          %268 = sbr.rel (%p266) target = $region24
        $region23: #{tpu_custom_call.1} parent=11 // pred_region
          %s270 = ssub.s32 4096, 4096
          %271 = vsyncadd [#allocation8], %s270
          %s272 = sshll.u32 [#allocation7], 4
          %s273 = int_to_ptr.vmem [resolvable:$true] %s272
          %278 = dma.hbm_to_vmem [thread:$0]  %s3, 4096, %s273, [#allocation8], 256, 256, 16
        $region24: #{tpu_custom_call.1} parent=11 // pred_fallthru
          _
        // Predicated region
        $region25: #{tpu_custom_call.1} parent=11 // pred_check
          %p279 = pneg %p135
        $region26: #{tpu_custom_call.1} parent=11 // pred_check_branch
          %281 = sbr.rel (%p279) target = $region28
        $region27: #{tpu_custom_call.1} parent=11 // pred_region
          %s283 = ssub.s32 4096, 4096
          %284 = vsyncadd [#allocation8], %s283
          %s285 = sshll.u32 [#allocation9], 4
          %s286 = int_to_ptr.vmem [resolvable:$true] %s285
          %291 = dma.hbm_to_vmem [thread:$0]  %s4, 4096, %s286, [#allocation8], 256, 256, 16
        $region28: #{tpu_custom_call.1} parent=11 // pred_fallthru
          _
        // Predicated region
        $region29: #{tpu_custom_call.1} parent=11 // pred_check
          %p292 = pneg %p156
        $region30: #{tpu_custom_call.1} parent=11 // pred_check_branch
          %294 = sbr.rel (%p292) target = $region32
        $region31: #{tpu_custom_call.1} parent=11 // pred_region
          _
        $region32: #{tpu_custom_call.1} parent=11 // pred_fallthru
          _
        // Predicated region
        $region33: #{tpu_custom_call.1} parent=11 // pred_check
          %p295 = pneg %p177
        $region34: #{tpu_custom_call.1} parent=11 // pred_check_branch
          %297 = sbr.rel (%p295) target = $region36
        $region35: #{tpu_custom_call.1} parent=11 // pred_region
          %s299 = ssub.s32 4096, 4096
          %300 = vsyncadd [#allocation11], %s299
          %s301 = sshll.u32 [#allocation10], 4
          %s302 = int_to_ptr.vmem [resolvable:$true] %s301
          %307 = dma.hbm_to_vmem [thread:$0]  %s6, 4096, %s302, [#allocation11], 128, 128, 8
        $region36: #{tpu_custom_call.1} parent=11 // pred_fallthru
          _
        // Predicated region
        $region37: #{tpu_custom_call.1} parent=11 // pred_check
          %p308 = pneg %p198
        $region38: #{tpu_custom_call.1} parent=11 // pred_check_branch
          %310 = sbr.rel (%p308) target = $region40
        $region39: #{tpu_custom_call.1} parent=11 // pred_region
          %s312 = ssub.s32 4096, 4096
          %313 = vsyncadd [#allocation11], %s312
          %s314 = sshll.u32 [#allocation12], 4
          %s315 = int_to_ptr.vmem [resolvable:$true] %s314
          %320 = dma.hbm_to_vmem [thread:$0]  %s7, 4096, %s315, [#allocation11], 128, 128, 8
        $region40: #{tpu_custom_call.1} parent=11 // pred_fallthru
          _
        // Predicated region
        $region41: #{tpu_custom_call.1} parent=11 // pred_check
          %p321 = pneg %p219
        $region42: #{tpu_custom_call.1} parent=11 // pred_check_branch
          %323 = sbr.rel (%p321) target = $region44
        $region43: #{tpu_custom_call.1} parent=11 // pred_region
          _
        $region44: #{tpu_custom_call.1} parent=11 // pred_fallthru
          _
      $region12: #{tpu_custom_call.1} parent=5 // pred_fallthru
        _
      %p324 = scmp.lt.s32.totalorder %s25, 2
      // Predicated region
      $region45: #{tpu_custom_call.1} parent=5 // pred_check
        %p325 = pneg %p324
      $region46: #{tpu_custom_call.1} parent=5 // pred_check_branch
        %327 = sbr.rel (%p325) target = $region48
      $region47: #{tpu_custom_call.1} parent=5 // pred_region
        // Predicated region
        $region49: #{tpu_custom_call.1} parent=47 // pred_check
          %p328 = pneg %p87
        $region50: #{tpu_custom_call.1} parent=47 // pred_check_branch
          %330 = sbr.rel (%p328) target = $region52
        $region51: #{tpu_custom_call.1} parent=47 // pred_region
          %s331 = sand.u32 %s77, 1
          %s332 = scalar_lea.sflag [#allocation5], %s331
          %s333 = sand.u32 %s77, 1
          %s334 = smul.addr %s333, 256
          %s335 = scalar_lea.vmem [#allocation4], %s334
          %s336 = smul.u32 32, %s25
          %s338 = ssub.s32 4096, 4096
          %339 = vsyncadd %s332, %s338
          %s340 = smul.addr %s336, 128
          %s341 = scalar_lea.hbm %s2, %s340
          %s342 = sshll.u32 %s335, 4
          %s343 = int_to_ptr.vmem [resolvable:$true] %s342
          %348 = dma.hbm_to_vmem [thread:$0]  %s341, 4096, %s343, %s332, 128, 128, 8
        $region52: #{tpu_custom_call.1} parent=47 // pred_fallthru
          _
      $region48: #{tpu_custom_call.1} parent=5 // pred_fallthru
        _
      %p349 = scmp.le.s32.totalorder 1, %s25
      %p350 = scmp.lt.s32.totalorder %s25, 3
      %p351 = pnand %p349, %p350
      %p352 = pneg %p351
      // Predicated region
      $region53: #{tpu_custom_call.1} parent=5 // pred_check
        _
      $region54: #{tpu_custom_call.1} parent=5 // pred_check_branch
        %354 = sbr.rel (%p351) target = $region56
      $region55: #{tpu_custom_call.1} parent=5 // pred_region
        %s355 = ssub.s32 %s25, 1
        %s356 = sand.u32 %s80, 1
        %s357 = scalar_lea.sflag [#allocation5], %s356
        %s358 = sand.u32 %s80, 1
        %s359 = smul.addr %s358, 256
        %s360 = scalar_lea.vmem [#allocation4], %s359
        // Predicated region
        $region57: #{tpu_custom_call.1} parent=55 // pred_check
          %p361 = pneg %p93
        $region58: #{tpu_custom_call.1} parent=55 // pred_check_branch
          %363 = sbr.rel (%p361) target = $region60
        $region59: #{tpu_custom_call.1} parent=55 // pred_region
          %364 = dma.done %s357, 4096
        $region60: #{tpu_custom_call.1} parent=55 // pred_fallthru
          _
        // Predicated region
        $region61: #{tpu_custom_call.1} parent=55 // pred_check
          %p365 = pneg %p114
        $region62: #{tpu_custom_call.1} parent=55 // pred_check_branch
          %367 = sbr.rel (%p365) target = $region64
        $region63: #{tpu_custom_call.1} parent=55 // pred_region
          %368 = dma.done [#allocation8], 4096
        $region64: #{tpu_custom_call.1} parent=55 // pred_fallthru
          _
        // Predicated region
        $region65: #{tpu_custom_call.1} parent=55 // pred_check
          %p369 = pneg %p135
        $region66: #{tpu_custom_call.1} parent=55 // pred_check_branch
          %371 = sbr.rel (%p369) target = $region68
        $region67: #{tpu_custom_call.1} parent=55 // pred_region
          %372 = dma.done [#allocation8], 4096
        $region68: #{tpu_custom_call.1} parent=55 // pred_fallthru
          _
        // Predicated region
        $region69: #{tpu_custom_call.1} parent=55 // pred_check
          %p373 = pneg %p177
        $region70: #{tpu_custom_call.1} parent=55 // pred_check_branch
          %375 = sbr.rel (%p373) target = $region72
        $region71: #{tpu_custom_call.1} parent=55 // pred_region
          %376 = dma.done [#allocation11], 4096
        $region72: #{tpu_custom_call.1} parent=55 // pred_fallthru
          _
        // Predicated region
        $region73: #{tpu_custom_call.1} parent=55 // pred_check
          %p377 = pneg %p198
        $region74: #{tpu_custom_call.1} parent=55 // pred_check_branch
          %379 = sbr.rel (%p377) target = $region76
        $region75: #{tpu_custom_call.1} parent=55 // pred_region
          %380 = dma.done [#allocation11], 4096
        $region76: #{tpu_custom_call.1} parent=55 // pred_fallthru
          _
        %p381 = pneg %p46
        %p382 = pneg %p43
        %p383 = pneg %p67
        %p384 = pneg %p64
        %s385 = sand.u32 %s80, 1
        %s386 = scalar_lea.sflag [#allocation5], %s385
        %s387 = sand.u32 %s80, 1
        %s388 = smul.addr %s387, 256
        %s389 = scalar_lea.vmem [#allocation4], %s388
        %p390 = pneg %p93
        %p391 = pneg %p90
        %p392 = pneg %p114
        %p393 = pneg %p111
        %p394 = pneg %p135
        %p395 = pneg %p132
        %p396 = pneg %p156
        %p397 = pneg %p153
        %p398 = pneg %p177
        %p399 = pneg %p174
        %p400 = pneg %p198
        %p401 = pneg %p195
        %p402 = pneg %p219
        %p403 = pneg %p216
        %p404 = pneg %p245
        %p405 = pneg %p242
        %s406 = sand.u32 %s232, 1
        %s407 = scalar_lea.sflag [#allocation6], %s406
        %s408 = sand.u32 %s232, 1
        %s409 = smul.addr %s408, 256
        %s410 = scalar_lea.vmem [#allocation13], %s409
        %s411 = smul.u32 32, %s30
        %s412 = smul.u32 32, %s30
        %v413 = vld [vmem:[#allocation7] sm:$0xff]
        %v414 = vld [vmem:[#allocation7 + $0x8] sm:$0xff]
        %v415 = vld [vmem:[#allocation7 + $0x10] sm:$0xff]
        %v416 = vld [vmem:[#allocation7 + $0x18] sm:$0xff]
        %v417 = vld [vmem:[#allocation7 + $0x20] sm:$0xff]
        %v418 = vld [vmem:[#allocation7 + $0x28] sm:$0xff]
        %v419 = vld [vmem:[#allocation7 + $0x30] sm:$0xff]
        %v420 = vld [vmem:[#allocation7 + $0x38] sm:$0xff]
        %v421 = vld [vmem:[#allocation7 + $0x40] sm:$0xff]
        %v422 = vld [vmem:[#allocation7 + $0x48] sm:$0xff]
        %v423 = vld [vmem:[#allocation7 + $0x50] sm:$0xff]
        %v424 = vld [vmem:[#allocation7 + $0x58] sm:$0xff]
        %v425 = vld [vmem:[#allocation7 + $0x60] sm:$0xff]
        %v426 = vld [vmem:[#allocation7 + $0x68] sm:$0xff]
        %v427 = vld [vmem:[#allocation7 + $0x70] sm:$0xff]
        %v428 = vld [vmem:[#allocation7 + $0x78] sm:$0xff]
        %v429 = vld [vmem:[#allocation7 + $0x80] sm:$0xff]
        %v430 = vld [vmem:[#allocation7 + $0x88] sm:$0xff]
        %v431 = vld [vmem:[#allocation7 + $0x90] sm:$0xff]
        %v432 = vld [vmem:[#allocation7 + $0x98] sm:$0xff]
        %v433 = vld [vmem:[#allocation7 + $0xa0] sm:$0xff]
        %v434 = vld [vmem:[#allocation7 + $0xa8] sm:$0xff]
        %v435 = vld [vmem:[#allocation7 + $0xb0] sm:$0xff]
        %v436 = vld [vmem:[#allocation7 + $0xb8] sm:$0xff]
        %v437 = vld [vmem:[#allocation7 + $0xc0] sm:$0xff]
        %v438 = vld [vmem:[#allocation7 + $0xc8] sm:$0xff]
        %v439 = vld [vmem:[#allocation7 + $0xd0] sm:$0xff]
        %v440 = vld [vmem:[#allocation7 + $0xd8] sm:$0xff]
        %v441 = vld [vmem:[#allocation7 + $0xe0] sm:$0xff]
        %v442 = vld [vmem:[#allocation7 + $0xe8] sm:$0xff]
        %v443 = vld [vmem:[#allocation7 + $0xf0] sm:$0xff]
        %v444 = vld [vmem:[#allocation7 + $0xf8] sm:$0xff]
        %s445 = sld [smem:[#allocation2]]
        %v446 = vld [vmem:[#allocation9] sm:$0xff]
        %v447 = vld [vmem:[#allocation9 + $0x8] sm:$0xff]
        %v448 = vld [vmem:[#allocation9 + $0x10] sm:$0xff]
        %v449 = vld [vmem:[#allocation9 + $0x18] sm:$0xff]
        %v450 = vld [vmem:[#allocation9 + $0x20] sm:$0xff]
        %v451 = vld [vmem:[#allocation9 + $0x28] sm:$0xff]
        %v452 = vld [vmem:[#allocation9 + $0x30] sm:$0xff]
        %v453 = vld [vmem:[#allocation9 + $0x38] sm:$0xff]
        %v454 = vld [vmem:[#allocation9 + $0x40] sm:$0xff]
        %v455 = vld [vmem:[#allocation9 + $0x48] sm:$0xff]
        %v456 = vld [vmem:[#allocation9 + $0x50] sm:$0xff]
        %v457 = vld [vmem:[#allocation9 + $0x58] sm:$0xff]
        %v458 = vld [vmem:[#allocation9 + $0x60] sm:$0xff]
        %v459 = vld [vmem:[#allocation9 + $0x68] sm:$0xff]
        %v460 = vld [vmem:[#allocation9 + $0x70] sm:$0xff]
        %v461 = vld [vmem:[#allocation9 + $0x78] sm:$0xff]
        %v462 = vld [vmem:[#allocation9 + $0x80] sm:$0xff]
        %v463 = vld [vmem:[#allocation9 + $0x88] sm:$0xff]
        %v464 = vld [vmem:[#allocation9 + $0x90] sm:$0xff]
        %v465 = vld [vmem:[#allocation9 + $0x98] sm:$0xff]
        %v466 = vld [vmem:[#allocation9 + $0xa0] sm:$0xff]
        %v467 = vld [vmem:[#allocation9 + $0xa8] sm:$0xff]
        %v468 = vld [vmem:[#allocation9 + $0xb0] sm:$0xff]
        %v469 = vld [vmem:[#allocation9 + $0xb8] sm:$0xff]
        %v470 = vld [vmem:[#allocation9 + $0xc0] sm:$0xff]
        %v471 = vld [vmem:[#allocation9 + $0xc8] sm:$0xff]
        %v472 = vld [vmem:[#allocation9 + $0xd0] sm:$0xff]
        %v473 = vld [vmem:[#allocation9 + $0xd8] sm:$0xff]
        %v474 = vld [vmem:[#allocation9 + $0xe0] sm:$0xff]
        %v475 = vld [vmem:[#allocation9 + $0xe8] sm:$0xff]
        %v476 = vld [vmem:[#allocation9 + $0xf0] sm:$0xff]
        %v477 = vld [vmem:[#allocation9 + $0xf8] sm:$0xff]
        %v478 = vstv %s445
        %v479 = vmul.f32 %v478, %v446
        %v480 = vmul.f32 %v478, %v447
        %v481 = vmul.f32 %v478, %v448
        %v482 = vmul.f32 %v478, %v449
        %v483 = vmul.f32 %v478, %v450
        %v484 = vmul.f32 %v478, %v451
        %v485 = vmul.f32 %v478, %v452
        %v486 = vmul.f32 %v478, %v453
        %v487 = vmul.f32 %v478, %v454
        %v488 = vmul.f32 %v478, %v455
        %v489 = vmul.f32 %v478, %v456
        %v490 = vmul.f32 %v478, %v457
        %v491 = vmul.f32 %v478, %v458
        %v492 = vmul.f32 %v478, %v459
        %v493 = vmul.f32 %v478, %v460
        %v494 = vmul.f32 %v478, %v461
        %v495 = vmul.f32 %v478, %v462
        %v496 = vmul.f32 %v478, %v463
        %v497 = vmul.f32 %v478, %v464
        %v498 = vmul.f32 %v478, %v465
        %v499 = vmul.f32 %v478, %v466
        %v500 = vmul.f32 %v478, %v467
        %v501 = vmul.f32 %v478, %v468
        %v502 = vmul.f32 %v478, %v469
        %v503 = vmul.f32 %v478, %v470
        %v504 = vmul.f32 %v478, %v471
        %v505 = vmul.f32 %v478, %v472
        %v506 = vmul.f32 %v478, %v473
        %v507 = vmul.f32 %v478, %v474
        %v508 = vmul.f32 %v478, %v475
        %v509 = vmul.f32 %v478, %v476
        %v510 = vmul.f32 %v478, %v477
        %v511 = vadd.f32 %v413, %v479
        %v512 = vadd.f32 %v414, %v480
        %v513 = vadd.f32 %v415, %v481
        %v514 = vadd.f32 %v416, %v482
        %v515 = vadd.f32 %v417, %v483
        %v516 = vadd.f32 %v418, %v484
        %v517 = vadd.f32 %v419, %v485
        %v518 = vadd.f32 %v420, %v486
        %v519 = vadd.f32 %v421, %v487
        %v520 = vadd.f32 %v422, %v488
        %v521 = vadd.f32 %v423, %v489
        %v522 = vadd.f32 %v424, %v490
        %v523 = vadd.f32 %v425, %v491
        %v524 = vadd.f32 %v426, %v492
        %v525 = vadd.f32 %v427, %v493
        %v526 = vadd.f32 %v428, %v494
        %v527 = vadd.f32 %v429, %v495
        %v528 = vadd.f32 %v430, %v496
        %v529 = vadd.f32 %v431, %v497
        %v530 = vadd.f32 %v432, %v498
        %v531 = vadd.f32 %v433, %v499
        %v532 = vadd.f32 %v434, %v500
        %v533 = vadd.f32 %v435, %v501
        %v534 = vadd.f32 %v436, %v502
        %v535 = vadd.f32 %v437, %v503
        %v536 = vadd.f32 %v438, %v504
        %v537 = vadd.f32 %v439, %v505
        %v538 = vadd.f32 %v440, %v506
        %v539 = vadd.f32 %v441, %v507
        %v540 = vadd.f32 %v442, %v508
        %v541 = vadd.f32 %v443, %v509
        %v542 = vadd.f32 %v444, %v510
        %v543 = vld [vmem:[#allocation10] sm:$0xff]
        %v544 = vld [vmem:[#allocation10 + $0x8] sm:$0xff]
        %v545 = vld [vmem:[#allocation10 + $0x10] sm:$0xff]
        %v546 = vld [vmem:[#allocation10 + $0x18] sm:$0xff]
        %v547 = vld [vmem:[#allocation10 + $0x20] sm:$0xff]
        %v548 = vld [vmem:[#allocation10 + $0x28] sm:$0xff]
        %v549 = vld [vmem:[#allocation10 + $0x30] sm:$0xff]
        %v550 = vld [vmem:[#allocation10 + $0x38] sm:$0xff]
        %v551 = vld [vmem:[#allocation10 + $0x40] sm:$0xff]
        %v552 = vld [vmem:[#allocation10 + $0x48] sm:$0xff]
        %v553 = vld [vmem:[#allocation10 + $0x50] sm:$0xff]
        %v554 = vld [vmem:[#allocation10 + $0x58] sm:$0xff]
        %v555 = vld [vmem:[#allocation10 + $0x60] sm:$0xff]
        %v556 = vld [vmem:[#allocation10 + $0x68] sm:$0xff]
        %v557 = vld [vmem:[#allocation10 + $0x70] sm:$0xff]
        %v558 = vld [vmem:[#allocation10 + $0x78] sm:$0xff]
        %v559 = vld [vmem:[#allocation10 + $0x80] sm:$0xff]
        %v560 = vld [vmem:[#allocation10 + $0x88] sm:$0xff]
        %v561 = vld [vmem:[#allocation10 + $0x90] sm:$0xff]
        %v562 = vld [vmem:[#allocation10 + $0x98] sm:$0xff]
        %v563 = vld [vmem:[#allocation10 + $0xa0] sm:$0xff]
        %v564 = vld [vmem:[#allocation10 + $0xa8] sm:$0xff]
        %v565 = vld [vmem:[#allocation10 + $0xb0] sm:$0xff]
        %v566 = vld [vmem:[#allocation10 + $0xb8] sm:$0xff]
        %v567 = vld [vmem:[#allocation10 + $0xc0] sm:$0xff]
        %v568 = vld [vmem:[#allocation10 + $0xc8] sm:$0xff]
        %v569 = vld [vmem:[#allocation10 + $0xd0] sm:$0xff]
        %v570 = vld [vmem:[#allocation10 + $0xd8] sm:$0xff]
        %v571 = vld [vmem:[#allocation10 + $0xe0] sm:$0xff]
        %v572 = vld [vmem:[#allocation10 + $0xe8] sm:$0xff]
        %v573 = vld [vmem:[#allocation10 + $0xf0] sm:$0xff]
        %v574 = vld [vmem:[#allocation10 + $0xf8] sm:$0xff]
        %s575 = sld [smem:[#allocation3]]
        %v576 = vld [vmem:[#allocation12] sm:$0xff]
        %v577 = vld [vmem:[#allocation12 + $0x8] sm:$0xff]
        %v578 = vld [vmem:[#allocation12 + $0x10] sm:$0xff]
        %v579 = vld [vmem:[#allocation12 + $0x18] sm:$0xff]
        %v580 = vld [vmem:[#allocation12 + $0x20] sm:$0xff]
        %v581 = vld [vmem:[#allocation12 + $0x28] sm:$0xff]
        %v582 = vld [vmem:[#allocation12 + $0x30] sm:$0xff]
        %v583 = vld [vmem:[#allocation12 + $0x38] sm:$0xff]
        %v584 = vld [vmem:[#allocation12 + $0x40] sm:$0xff]
        %v585 = vld [vmem:[#allocation12 + $0x48] sm:$0xff]
        %v586 = vld [vmem:[#allocation12 + $0x50] sm:$0xff]
        %v587 = vld [vmem:[#allocation12 + $0x58] sm:$0xff]
        %v588 = vld [vmem:[#allocation12 + $0x60] sm:$0xff]
        %v589 = vld [vmem:[#allocation12 + $0x68] sm:$0xff]
        %v590 = vld [vmem:[#allocation12 + $0x70] sm:$0xff]
        %v591 = vld [vmem:[#allocation12 + $0x78] sm:$0xff]
        %v592 = vld [vmem:[#allocation12 + $0x80] sm:$0xff]
        %v593 = vld [vmem:[#allocation12 + $0x88] sm:$0xff]
        %v594 = vld [vmem:[#allocation12 + $0x90] sm:$0xff]
        %v595 = vld [vmem:[#allocation12 + $0x98] sm:$0xff]
        %v596 = vld [vmem:[#allocation12 + $0xa0] sm:$0xff]
        %v597 = vld [vmem:[#allocation12 + $0xa8] sm:$0xff]
        %v598 = vld [vmem:[#allocation12 + $0xb0] sm:$0xff]
        %v599 = vld [vmem:[#allocation12 + $0xb8] sm:$0xff]
        %v600 = vld [vmem:[#allocation12 + $0xc0] sm:$0xff]
        %v601 = vld [vmem:[#allocation12 + $0xc8] sm:$0xff]
        %v602 = vld [vmem:[#allocation12 + $0xd0] sm:$0xff]
        %v603 = vld [vmem:[#allocation12 + $0xd8] sm:$0xff]
        %v604 = vld [vmem:[#allocation12 + $0xe0] sm:$0xff]
        %v605 = vld [vmem:[#allocation12 + $0xe8] sm:$0xff]
        %v606 = vld [vmem:[#allocation12 + $0xf0] sm:$0xff]
        %v607 = vld [vmem:[#allocation12 + $0xf8] sm:$0xff]
        %v608 = vstv %s575
        %v609 = vmul.f32 %v608, %v576
        %v610 = vmul.f32 %v608, %v577
        %v611 = vmul.f32 %v608, %v578
        %v612 = vmul.f32 %v608, %v579
        %v613 = vmul.f32 %v608, %v580
        %v614 = vmul.f32 %v608, %v581
        %v615 = vmul.f32 %v608, %v582
        %v616 = vmul.f32 %v608, %v583
        %v617 = vmul.f32 %v608, %v584
        %v618 = vmul.f32 %v608, %v585
        %v619 = vmul.f32 %v608, %v586
        %v620 = vmul.f32 %v608, %v587
        %v621 = vmul.f32 %v608, %v588
        %v622 = vmul.f32 %v608, %v589
        %v623 = vmul.f32 %v608, %v590
        %v624 = vmul.f32 %v608, %v591
        %v625 = vmul.f32 %v608, %v592
        %v626 = vmul.f32 %v608, %v593
        %v627 = vmul.f32 %v608, %v594
        %v628 = vmul.f32 %v608, %v595
        %v629 = vmul.f32 %v608, %v596
        %v630 = vmul.f32 %v608, %v597
        %v631 = vmul.f32 %v608, %v598
        %v632 = vmul.f32 %v608, %v599
        %v633 = vmul.f32 %v608, %v600
        %v634 = vmul.f32 %v608, %v601
        %v635 = vmul.f32 %v608, %v602
        %v636 = vmul.f32 %v608, %v603
        %v637 = vmul.f32 %v608, %v604
        %v638 = vmul.f32 %v608, %v605
        %v639 = vmul.f32 %v608, %v606
        %v640 = vmul.f32 %v608, %v607
        %v641 = vadd.f32 %v543, %v609
        %v642 = vadd.f32 %v544, %v610
        %v643 = vadd.f32 %v545, %v611
        %v644 = vadd.f32 %v546, %v612
        %v645 = vadd.f32 %v547, %v613
        %v646 = vadd.f32 %v548, %v614
        %v647 = vadd.f32 %v549, %v615
        %v648 = vadd.f32 %v550, %v616
        %v649 = vadd.f32 %v551, %v617
        %v650 = vadd.f32 %v552, %v618
        %v651 = vadd.f32 %v553, %v619
        %v652 = vadd.f32 %v554, %v620
        %v653 = vadd.f32 %v555, %v621
        %v654 = vadd.f32 %v556, %v622
        %v655 = vadd.f32 %v557, %v623
        %v656 = vadd.f32 %v558, %v624
        %v657 = vadd.f32 %v559, %v625
        %v658 = vadd.f32 %v560, %v626
        %v659 = vadd.f32 %v561, %v627
        %v660 = vadd.f32 %v562, %v628
        %v661 = vadd.f32 %v563, %v629
        %v662 = vadd.f32 %v564, %v630
        %v663 = vadd.f32 %v565, %v631
        %v664 = vadd.f32 %v566, %v632
        %v665 = vadd.f32 %v567, %v633
        %v666 = vadd.f32 %v568, %v634
        %v667 = vadd.f32 %v569, %v635
        %v668 = vadd.f32 %v570, %v636
        %v669 = vadd.f32 %v571, %v637
        %v670 = vadd.f32 %v572, %v638
        %v671 = vadd.f32 %v573, %v639
        %v672 = vadd.f32 %v574, %v640
        %v673 = vld [vmem:[%s360] sm:$0xff]
        %v674 = vld [vmem:[%s360 + $0x8] sm:$0xff]
        %v675 = vld [vmem:[%s360 + $0x10] sm:$0xff]
        %v676 = vld [vmem:[%s360 + $0x18] sm:$0xff]
        %v677 = vld [vmem:[%s360 + $0x20] sm:$0xff]
        %v678 = vld [vmem:[%s360 + $0x28] sm:$0xff]
        %v679 = vld [vmem:[%s360 + $0x30] sm:$0xff]
        %v680 = vld [vmem:[%s360 + $0x38] sm:$0xff]
        %v681 = vld [vmem:[%s360 + $0x40] sm:$0xff]
        %v682 = vld [vmem:[%s360 + $0x48] sm:$0xff]
        %v683 = vld [vmem:[%s360 + $0x50] sm:$0xff]
        %v684 = vld [vmem:[%s360 + $0x58] sm:$0xff]
        %v685 = vld [vmem:[%s360 + $0x60] sm:$0xff]
        %v686 = vld [vmem:[%s360 + $0x68] sm:$0xff]
        %v687 = vld [vmem:[%s360 + $0x70] sm:$0xff]
        %v688 = vld [vmem:[%s360 + $0x78] sm:$0xff]
        %v689 = vld [vmem:[%s360 + $0x80] sm:$0xff]
        %v690 = vld [vmem:[%s360 + $0x88] sm:$0xff]
        %v691 = vld [vmem:[%s360 + $0x90] sm:$0xff]
        %v692 = vld [vmem:[%s360 + $0x98] sm:$0xff]
        %v693 = vld [vmem:[%s360 + $0xa0] sm:$0xff]
        %v694 = vld [vmem:[%s360 + $0xa8] sm:$0xff]
        %v695 = vld [vmem:[%s360 + $0xb0] sm:$0xff]
        %v696 = vld [vmem:[%s360 + $0xb8] sm:$0xff]
        %v697 = vld [vmem:[%s360 + $0xc0] sm:$0xff]
        %v698 = vld [vmem:[%s360 + $0xc8] sm:$0xff]
        %v699 = vld [vmem:[%s360 + $0xd0] sm:$0xff]
        %v700 = vld [vmem:[%s360 + $0xd8] sm:$0xff]
        %v701 = vld [vmem:[%s360 + $0xe0] sm:$0xff]
        %v702 = vld [vmem:[%s360 + $0xe8] sm:$0xff]
        %v703 = vld [vmem:[%s360 + $0xf0] sm:$0xff]
        %v704 = vld [vmem:[%s360 + $0xf8] sm:$0xff]
        %v705 = vld [vmem:[%s5] sm:$0x3]
        %v707 = vlaneseq
        %v708 = vshrl.u32 %v707, 7
        %v709 = vsub.s32 0, %v708
        %v710 = vrot.slane %v705, %v709
        %v711 = vlaneseq
        %v712 = vshrl.u32 %v711, 7
        %v713 = vsub.s32 1, %v712
        %v714 = vrot.slane %v705, %v713
        %717 = vmatprep.subr.mxu0 %v542
        %718 = vmatpush1.msra.mxu0 %v541
        %719 = vmatprep.subr.mxu0 %v540
        %720 = vmatpush1.msra.mxu0 %v539
        %721 = vmatprep.subr.mxu0 %v538
        %722 = vmatpush1.msra.mxu0 %v537
        %723 = vmatprep.subr.mxu0 %v536
        %724 = vmatpush1.msra.mxu0 %v535
        %725 = vmatprep.subr.mxu0 %v534
        %726 = vmatpush1.msra.mxu0 %v533
        %727 = vmatprep.subr.mxu0 %v532
        %728 = vmatpush1.msra.mxu0 %v531
        %729 = vmatprep.subr.mxu0 %v530
        %730 = vmatpush1.msra.mxu0 %v529
        %731 = vmatprep.subr.mxu0 %v528
        %732 = vmatpush1.msra.mxu0 %v527
        %733 = vmatprep.subr.mxu0 %v526
        %734 = vmatpush1.msra.mxu0 %v525
        %735 = vmatprep.subr.mxu0 %v524
        %736 = vmatpush1.msra.mxu0 %v523
        %737 = vmatprep.subr.mxu0 %v522
        %738 = vmatpush1.msra.mxu0 %v521
        %739 = vmatprep.subr.mxu0 %v520
        %740 = vmatpush1.msra.mxu0 %v519
        %741 = vmatprep.subr.mxu0 %v518
        %742 = vmatpush1.msra.mxu0 %v517
        %743 = vmatprep.subr.mxu0 %v516
        %744 = vmatpush1.msra.mxu0 %v515
        %745 = vmatprep.subr.mxu0 %v514
        %746 = vmatpush1.msra.mxu0 %v513
        %747 = vmatprep.subr.mxu0 %v512
        %748 = vmatpush1.msra.mxu0 %v511
        %749 = vmatprep.subr.mxu0 0.0
        %750 = vmatpush2.msra.mxu0 0.0
        %751 = vmatprep.subr.mxu0 0.0
        %752 = vmatpush2.msra.mxu0 0.0
        %753 = vmatprep.subr.mxu0 0.0
        %754 = vmatpush2.msra.mxu0 0.0
        %755 = vmatprep.subr.mxu0 0.0
        %756 = vmatpush2.msra.mxu0 0.0
        %757 = vmatprep.subr.mxu0 0.0
        %758 = vmatpush2.msra.mxu0 0.0
        %759 = vmatprep.subr.mxu0 0.0
        %760 = vmatpush2.msra.mxu0 0.0
        %761 = vmatprep.subr.mxu0 0.0
        %762 = vmatpush2.msra.mxu0 0.0
        %763 = vmatprep.subr.mxu0 0.0
        %764 = vmatpush2.msra.mxu0 0.0
        %765 = vmatprep.subr.mxu0 0.0
        %766 = vmatpush2.msra.mxu0 0.0
        %767 = vmatprep.subr.mxu0 0.0
        %768 = vmatpush2.msra.mxu0 0.0
        %769 = vmatprep.subr.mxu0 0.0
        %770 = vmatpush2.msra.mxu0 0.0
        %771 = vmatprep.subr.mxu0 0.0
        %772 = vmatpush2.msra.mxu0 0.0
        %773 = vmatprep.subr.mxu0 0.0
        %774 = vmatpush2.msra.mxu0 0.0
        %775 = vmatprep.subr.mxu0 0.0
        %776 = vmatpush2.msra.mxu0 0.0
        %777 = vmatprep.subr.mxu0 0.0
        %778 = vmatpush2.msra.mxu0 0.0
        %779 = vmatprep.subr.mxu0 0.0
        %780 = vmatpush2.msra.mxu0 0.0
        %781 = vmatprep.mubr.f32.mxu0 0.0
        %782 = vmatmul.mubr.f32.gmra.mxu0 %v673
        %v783 = vpop.f32.mrf.mxu0
        %v784 = vadd.f32 %v710, %v783
        %v785 = vpop.f32.mrf.mxu0
        %v786 = vadd.f32 %v714, %v785
        %787 = vmatprep.mubr.f32.mxu0 0.0
        %788 = vmatmul.mubr.f32.gmra.mxu0 %v674
        %v789 = vpop.f32.mrf.mxu0
        %v790 = vadd.f32 %v710, %v789
        %v791 = vpop.f32.mrf.mxu0
        %v792 = vadd.f32 %v714, %v791
        %793 = vmatprep.mubr.f32.mxu0 0.0
        %794 = vmatmul.mubr.f32.gmra.mxu0 %v675
        %v795 = vpop.f32.mrf.mxu0
        %v796 = vadd.f32 %v710, %v795
        %v797 = vpop.f32.mrf.mxu0
        %v798 = vadd.f32 %v714, %v797
        %799 = vmatprep.mubr.f32.mxu0 0.0
        %800 = vmatmul.mubr.f32.gmra.mxu0 %v676
        %v801 = vpop.f32.mrf.mxu0
        %v802 = vadd.f32 %v710, %v801
        %v803 = vpop.f32.mrf.mxu0
        %v804 = vadd.f32 %v714, %v803
        %805 = vmatprep.mubr.f32.mxu0 0.0
        %806 = vmatmul.mubr.f32.gmra.mxu0 %v677
        %v807 = vpop.f32.mrf.mxu0
        %v808 = vadd.f32 %v710, %v807
        %v809 = vpop.f32.mrf.mxu0
        %v810 = vadd.f32 %v714, %v809
        %811 = vmatprep.mubr.f32.mxu0 0.0
        %812 = vmatmul.mubr.f32.gmra.mxu0 %v678
        %v813 = vpop.f32.mrf.mxu0
        %v814 = vadd.f32 %v710, %v813
        %v815 = vpop.f32.mrf.mxu0
        %v816 = vadd.f32 %v714, %v815
        %817 = vmatprep.mubr.f32.mxu0 0.0
        %818 = vmatmul.mubr.f32.gmra.mxu0 %v679
        %v819 = vpop.f32.mrf.mxu0
        %v820 = vadd.f32 %v710, %v819
        %v821 = vpop.f32.mrf.mxu0
        %v822 = vadd.f32 %v714, %v821
        %823 = vmatprep.mubr.f32.mxu0 0.0
        %824 = vmatmul.mubr.f32.gmra.mxu0 %v680
        %v825 = vpop.f32.mrf.mxu0
        %v826 = vadd.f32 %v710, %v825
        %v827 = vpop.f32.mrf.mxu0
        %v828 = vadd.f32 %v714, %v827
        %829 = vmatprep.mubr.f32.mxu0 0.0
        %830 = vmatmul.mubr.f32.gmra.mxu0 %v681
        %v831 = vpop.f32.mrf.mxu0
        %v832 = vadd.f32 %v710, %v831
        %v833 = vpop.f32.mrf.mxu0
        %v834 = vadd.f32 %v714, %v833
        %835 = vmatprep.mubr.f32.mxu0 0.0
        %836 = vmatmul.mubr.f32.gmra.mxu0 %v682
        %v837 = vpop.f32.mrf.mxu0
        %v838 = vadd.f32 %v710, %v837
        %v839 = vpop.f32.mrf.mxu0
        %v840 = vadd.f32 %v714, %v839
        %841 = vmatprep.mubr.f32.mxu0 0.0
        %842 = vmatmul.mubr.f32.gmra.mxu0 %v683
        %v843 = vpop.f32.mrf.mxu0
        %v844 = vadd.f32 %v710, %v843
        %v845 = vpop.f32.mrf.mxu0
        %v846 = vadd.f32 %v714, %v845
        %847 = vmatprep.mubr.f32.mxu0 0.0
        %848 = vmatmul.mubr.f32.gmra.mxu0 %v684
        %v849 = vpop.f32.mrf.mxu0
        %v850 = vadd.f32 %v710, %v849
        %v851 = vpop.f32.mrf.mxu0
        %v852 = vadd.f32 %v714, %v851
        %853 = vmatprep.mubr.f32.mxu0 0.0
        %854 = vmatmul.mubr.f32.gmra.mxu0 %v685
        %v855 = vpop.f32.mrf.mxu0
        %v856 = vadd.f32 %v710, %v855
        %v857 = vpop.f32.mrf.mxu0
        %v858 = vadd.f32 %v714, %v857
        %859 = vmatprep.mubr.f32.mxu0 0.0
        %860 = vmatmul.mubr.f32.gmra.mxu0 %v686
        %v861 = vpop.f32.mrf.mxu0
        %v862 = vadd.f32 %v710, %v861
        %v863 = vpop.f32.mrf.mxu0
        %v864 = vadd.f32 %v714, %v863
        %865 = vmatprep.mubr.f32.mxu0 0.0
        %866 = vmatmul.mubr.f32.gmra.mxu0 %v687
        %v867 = vpop.f32.mrf.mxu0
        %v868 = vadd.f32 %v710, %v867
        %v869 = vpop.f32.mrf.mxu0
        %v870 = vadd.f32 %v714, %v869
        %871 = vmatprep.mubr.f32.mxu0 0.0
        %872 = vmatmul.mubr.f32.gmra.mxu0 %v688
        %v873 = vpop.f32.mrf.mxu0
        %v874 = vadd.f32 %v710, %v873
        %v875 = vpop.f32.mrf.mxu0
        %v876 = vadd.f32 %v714, %v875
        %877 = vmatprep.mubr.f32.mxu0 0.0
        %878 = vmatmul.mubr.f32.gmra.mxu0 %v689
        %v879 = vpop.f32.mrf.mxu0
        %v880 = vadd.f32 %v710, %v879
        %v881 = vpop.f32.mrf.mxu0
        %v882 = vadd.f32 %v714, %v881
        %883 = vmatprep.mubr.f32.mxu0 0.0
        %884 = vmatmul.mubr.f32.gmra.mxu0 %v690
        %v885 = vpop.f32.mrf.mxu0
        %v886 = vadd.f32 %v710, %v885
        %v887 = vpop.f32.mrf.mxu0
        %v888 = vadd.f32 %v714, %v887
        %889 = vmatprep.mubr.f32.mxu0 0.0
        %890 = vmatmul.mubr.f32.gmra.mxu0 %v691
        %v891 = vpop.f32.mrf.mxu0
        %v892 = vadd.f32 %v710, %v891
        %v893 = vpop.f32.mrf.mxu0
        %v894 = vadd.f32 %v714, %v893
        %895 = vmatprep.mubr.f32.mxu0 0.0
        %896 = vmatmul.mubr.f32.gmra.mxu0 %v692
        %v897 = vpop.f32.mrf.mxu0
        %v898 = vadd.f32 %v710, %v897
        %v899 = vpop.f32.mrf.mxu0
        %v900 = vadd.f32 %v714, %v899
        %901 = vmatprep.mubr.f32.mxu0 0.0
        %902 = vmatmul.mubr.f32.gmra.mxu0 %v693
        %v903 = vpop.f32.mrf.mxu0
        %v904 = vadd.f32 %v710, %v903
        %v905 = vpop.f32.mrf.mxu0
        %v906 = vadd.f32 %v714, %v905
        %907 = vmatprep.mubr.f32.mxu0 0.0
        %908 = vmatmul.mubr.f32.gmra.mxu0 %v694
        %v909 = vpop.f32.mrf.mxu0
        %v910 = vadd.f32 %v710, %v909
        %v911 = vpop.f32.mrf.mxu0
        %v912 = vadd.f32 %v714, %v911
        %913 = vmatprep.mubr.f32.mxu0 0.0
        %914 = vmatmul.mubr.f32.gmra.mxu0 %v695
        %v915 = vpop.f32.mrf.mxu0
        %v916 = vadd.f32 %v710, %v915
        %v917 = vpop.f32.mrf.mxu0
        %v918 = vadd.f32 %v714, %v917
        %919 = vmatprep.mubr.f32.mxu0 0.0
        %920 = vmatmul.mubr.f32.gmra.mxu0 %v696
        %v921 = vpop.f32.mrf.mxu0
        %v922 = vadd.f32 %v710, %v921
        %v923 = vpop.f32.mrf.mxu0
        %v924 = vadd.f32 %v714, %v923
        %925 = vmatprep.mubr.f32.mxu0 0.0
        %926 = vmatmul.mubr.f32.gmra.mxu0 %v697
        %v927 = vpop.f32.mrf.mxu0
        %v928 = vadd.f32 %v710, %v927
        %v929 = vpop.f32.mrf.mxu0
        %v930 = vadd.f32 %v714, %v929
        %931 = vmatprep.mubr.f32.mxu0 0.0
        %932 = vmatmul.mubr.f32.gmra.mxu0 %v698
        %v933 = vpop.f32.mrf.mxu0
        %v934 = vadd.f32 %v710, %v933
        %v935 = vpop.f32.mrf.mxu0
        %v936 = vadd.f32 %v714, %v935
        %937 = vmatprep.mubr.f32.mxu0 0.0
        %938 = vmatmul.mubr.f32.gmra.mxu0 %v699
        %v939 = vpop.f32.mrf.mxu0
        %v940 = vadd.f32 %v710, %v939
        %v941 = vpop.f32.mrf.mxu0
        %v942 = vadd.f32 %v714, %v941
        %943 = vmatprep.mubr.f32.mxu0 0.0
        %944 = vmatmul.mubr.f32.gmra.mxu0 %v700
        %v945 = vpop.f32.mrf.mxu0
        %v946 = vadd.f32 %v710, %v945
        %v947 = vpop.f32.mrf.mxu0
        %v948 = vadd.f32 %v714, %v947
        %949 = vmatprep.mubr.f32.mxu0 0.0
        %950 = vmatmul.mubr.f32.gmra.mxu0 %v701
        %v951 = vpop.f32.mrf.mxu0
        %v952 = vadd.f32 %v710, %v951
        %v953 = vpop.f32.mrf.mxu0
        %v954 = vadd.f32 %v714, %v953
        %955 = vmatprep.mubr.f32.mxu0 0.0
        %956 = vmatmul.mubr.f32.gmra.mxu0 %v702
        %v957 = vpop.f32.mrf.mxu0
        %v958 = vadd.f32 %v710, %v957
        %v959 = vpop.f32.mrf.mxu0
        %v960 = vadd.f32 %v714, %v959
        %961 = vmatprep.mubr.f32.mxu0 0.0
        %962 = vmatmul.mubr.f32.gmra.mxu0 %v703
        %v963 = vpop.f32.mrf.mxu0
        %v964 = vadd.f32 %v710, %v963
        %v965 = vpop.f32.mrf.mxu0
        %v966 = vadd.f32 %v714, %v965
        %967 = vmatprep.mubr.f32.mxu0 0.0
        %968 = vmatmul.mubr.f32.gmra.mxu0 %v704
        %v969 = vpop.f32.mrf.mxu0
        %v970 = vadd.f32 %v710, %v969
        %v971 = vpop.f32.mrf.mxu0
        %v972 = vadd.f32 %v714, %v971
        %973 = vdwg.mxu0
        %v974 = vmax.f32 %v784, 0.0
        %v975 = vmax.f32 %v786, 0.0
        %v976 = vmax.f32 %v790, 0.0
        %v977 = vmax.f32 %v792, 0.0
        %v978 = vmax.f32 %v796, 0.0
        %v979 = vmax.f32 %v798, 0.0
        %v980 = vmax.f32 %v802, 0.0
        %v981 = vmax.f32 %v804, 0.0
        %v982 = vmax.f32 %v808, 0.0
        %v983 = vmax.f32 %v810, 0.0
        %v984 = vmax.f32 %v814, 0.0
        %v985 = vmax.f32 %v816, 0.0
        %v986 = vmax.f32 %v820, 0.0
        %v987 = vmax.f32 %v822, 0.0
        %v988 = vmax.f32 %v826, 0.0
        %v989 = vmax.f32 %v828, 0.0
        %v990 = vmax.f32 %v832, 0.0
        %v991 = vmax.f32 %v834, 0.0
        %v992 = vmax.f32 %v838, 0.0
        %v993 = vmax.f32 %v840, 0.0
        %v994 = vmax.f32 %v844, 0.0
        %v995 = vmax.f32 %v846, 0.0
        %v996 = vmax.f32 %v850, 0.0
        %v997 = vmax.f32 %v852, 0.0
        %v998 = vmax.f32 %v856, 0.0
        %v999 = vmax.f32 %v858, 0.0
        %v1000 = vmax.f32 %v862, 0.0
        %v1001 = vmax.f32 %v864, 0.0
        %v1002 = vmax.f32 %v868, 0.0
        %v1003 = vmax.f32 %v870, 0.0
        %v1004 = vmax.f32 %v874, 0.0
        %v1005 = vmax.f32 %v876, 0.0
        %v1006 = vmax.f32 %v880, 0.0
        %v1007 = vmax.f32 %v882, 0.0
        %v1008 = vmax.f32 %v886, 0.0
        %v1009 = vmax.f32 %v888, 0.0
        %v1010 = vmax.f32 %v892, 0.0
        %v1011 = vmax.f32 %v894, 0.0
        %v1012 = vmax.f32 %v898, 0.0
        %v1013 = vmax.f32 %v900, 0.0
        %v1014 = vmax.f32 %v904, 0.0
        %v1015 = vmax.f32 %v906, 0.0
        %v1016 = vmax.f32 %v910, 0.0
        %v1017 = vmax.f32 %v912, 0.0
        %v1018 = vmax.f32 %v916, 0.0
        %v1019 = vmax.f32 %v918, 0.0
        %v1020 = vmax.f32 %v922, 0.0
        %v1021 = vmax.f32 %v924, 0.0
        %v1022 = vmax.f32 %v928, 0.0
        %v1023 = vmax.f32 %v930, 0.0
        %v1024 = vmax.f32 %v934, 0.0
        %v1025 = vmax.f32 %v936, 0.0
        %v1026 = vmax.f32 %v940, 0.0
        %v1027 = vmax.f32 %v942, 0.0
        %v1028 = vmax.f32 %v946, 0.0
        %v1029 = vmax.f32 %v948, 0.0
        %v1030 = vmax.f32 %v952, 0.0
        %v1031 = vmax.f32 %v954, 0.0
        %v1032 = vmax.f32 %v958, 0.0
        %v1033 = vmax.f32 %v960, 0.0
        %v1034 = vmax.f32 %v964, 0.0
        %v1035 = vmax.f32 %v966, 0.0
        %v1036 = vmax.f32 %v970, 0.0
        %v1037 = vmax.f32 %v972, 0.0
        %v1038 = vld [vmem:[%s8] sm:$0x1]
        %v1040 = vlaneseq
        %v1041 = vshrl.u32 %v1040, 7
        %v1042 = vsub.s32 0, %v1041
        %v1043 = vrot.slane %v1038, %v1042
        %1045 = vmatprep.subr.mxu0 0.0
        %1046 = vmatpush1.msra.mxu0 %v656
        %1047 = vmatprep.subr.mxu0 0.0
        %1048 = vmatpush1.msra.mxu0 %v655
        %1049 = vmatprep.subr.mxu0 0.0
        %1050 = vmatpush1.msra.mxu0 %v654
        %1051 = vmatprep.subr.mxu0 0.0
        %1052 = vmatpush1.msra.mxu0 %v653
        %1053 = vmatprep.subr.mxu0 0.0
        %1054 = vmatpush1.msra.mxu0 %v652
        %1055 = vmatprep.subr.mxu0 0.0
        %1056 = vmatpush1.msra.mxu0 %v651
        %1057 = vmatprep.subr.mxu0 0.0
        %1058 = vmatpush1.msra.mxu0 %v650
        %1059 = vmatprep.subr.mxu0 0.0
        %1060 = vmatpush1.msra.mxu0 %v649
        %1061 = vmatprep.subr.mxu0 0.0
        %1062 = vmatpush1.msra.mxu0 %v648
        %1063 = vmatprep.subr.mxu0 0.0
        %1064 = vmatpush1.msra.mxu0 %v647
        %1065 = vmatprep.subr.mxu0 0.0
        %1066 = vmatpush1.msra.mxu0 %v646
        %1067 = vmatprep.subr.mxu0 0.0
        %1068 = vmatpush1.msra.mxu0 %v645
        %1069 = vmatprep.subr.mxu0 0.0
        %1070 = vmatpush1.msra.mxu0 %v644
        %1071 = vmatprep.subr.mxu0 0.0
        %1072 = vmatpush1.msra.mxu0 %v643
        %1073 = vmatprep.subr.mxu0 0.0
        %1074 = vmatpush1.msra.mxu0 %v642
        %1075 = vmatprep.subr.mxu0 0.0
        %1076 = vmatpush1.msra.mxu0 %v641
        %1077 = vmatprep.subr.mxu0 0.0
        %1078 = vmatpush2.msra.mxu0 %v672
        %1079 = vmatprep.subr.mxu0 0.0
        %1080 = vmatpush2.msra.mxu0 %v671
        %1081 = vmatprep.subr.mxu0 0.0
        %1082 = vmatpush2.msra.mxu0 %v670
        %1083 = vmatprep.subr.mxu0 0.0
        %1084 = vmatpush2.msra.mxu0 %v669
        %1085 = vmatprep.subr.mxu0 0.0
        %1086 = vmatpush2.msra.mxu0 %v668
        %1087 = vmatprep.subr.mxu0 0.0
        %1088 = vmatpush2.msra.mxu0 %v667
        %1089 = vmatprep.subr.mxu0 0.0
        %1090 = vmatpush2.msra.mxu0 %v666
        %1091 = vmatprep.subr.mxu0 0.0
        %1092 = vmatpush2.msra.mxu0 %v665
        %1093 = vmatprep.subr.mxu0 0.0
        %1094 = vmatpush2.msra.mxu0 %v664
        %1095 = vmatprep.subr.mxu0 0.0
        %1096 = vmatpush2.msra.mxu0 %v663
        %1097 = vmatprep.subr.mxu0 0.0
        %1098 = vmatpush2.msra.mxu0 %v662
        %1099 = vmatprep.subr.mxu0 0.0
        %1100 = vmatpush2.msra.mxu0 %v661
        %1101 = vmatprep.subr.mxu0 0.0
        %1102 = vmatpush2.msra.mxu0 %v660
        %1103 = vmatprep.subr.mxu0 0.0
        %1104 = vmatpush2.msra.mxu0 %v659
        %1105 = vmatprep.subr.mxu0 0.0
        %1106 = vmatpush2.msra.mxu0 %v658
        %1107 = vmatprep.subr.mxu0 0.0
        %1108 = vmatpush2.msra.mxu0 %v657
        %1109 = vmatprep.mubr.f32.mxu0 %v975
        %1110 = vmatmul.mubr.f32.gmra.mxu0 %v974
        %v1111 = vpop.f32.mrf.mxu0
        %v1112 = vadd.f32 %v1043, %v1111
        %v1113 = vpop.f32.mrf.mxu0
        %1114 = vmatprep.mubr.f32.mxu0 %v977
        %1115 = vmatmul.mubr.f32.gmra.mxu0 %v976
        %v1116 = vpop.f32.mrf.mxu0
        %v1117 = vadd.f32 %v1043, %v1116
        %v1118 = vpop.f32.mrf.mxu0
        %1119 = vmatprep.mubr.f32.mxu0 %v979
        %1120 = vmatmul.mubr.f32.gmra.mxu0 %v978
        %v1121 = vpop.f32.mrf.mxu0
        %v1122 = vadd.f32 %v1043, %v1121
        %v1123 = vpop.f32.mrf.mxu0
        %1124 = vmatprep.mubr.f32.mxu0 %v981
        %1125 = vmatmul.mubr.f32.gmra.mxu0 %v980
        %v1126 = vpop.f32.mrf.mxu0
        %v1127 = vadd.f32 %v1043, %v1126
        %v1128 = vpop.f32.mrf.mxu0
        %1129 = vmatprep.mubr.f32.mxu0 %v983
        %1130 = vmatmul.mubr.f32.gmra.mxu0 %v982
        %v1131 = vpop.f32.mrf.mxu0
        %v1132 = vadd.f32 %v1043, %v1131
        %v1133 = vpop.f32.mrf.mxu0
        %1134 = vmatprep.mubr.f32.mxu0 %v985
        %1135 = vmatmul.mubr.f32.gmra.mxu0 %v984
        %v1136 = vpop.f32.mrf.mxu0
        %v1137 = vadd.f32 %v1043, %v1136
        %v1138 = vpop.f32.mrf.mxu0
        %1139 = vmatprep.mubr.f32.mxu0 %v987
        %1140 = vmatmul.mubr.f32.gmra.mxu0 %v986
        %v1141 = vpop.f32.mrf.mxu0
        %v1142 = vadd.f32 %v1043, %v1141
        %v1143 = vpop.f32.mrf.mxu0
        %1144 = vmatprep.mubr.f32.mxu0 %v989
        %1145 = vmatmul.mubr.f32.gmra.mxu0 %v988
        %v1146 = vpop.f32.mrf.mxu0
        %v1147 = vadd.f32 %v1043, %v1146
        %v1148 = vpop.f32.mrf.mxu0
        %1149 = vmatprep.mubr.f32.mxu0 %v991
        %1150 = vmatmul.mubr.f32.gmra.mxu0 %v990
        %v1151 = vpop.f32.mrf.mxu0
        %v1152 = vadd.f32 %v1043, %v1151
        %v1153 = vpop.f32.mrf.mxu0
        %1154 = vmatprep.mubr.f32.mxu0 %v993
        %1155 = vmatmul.mubr.f32.gmra.mxu0 %v992
        %v1156 = vpop.f32.mrf.mxu0
        %v1157 = vadd.f32 %v1043, %v1156
        %v1158 = vpop.f32.mrf.mxu0
        %1159 = vmatprep.mubr.f32.mxu0 %v995
        %1160 = vmatmul.mubr.f32.gmra.mxu0 %v994
        %v1161 = vpop.f32.mrf.mxu0
        %v1162 = vadd.f32 %v1043, %v1161
        %v1163 = vpop.f32.mrf.mxu0
        %1164 = vmatprep.mubr.f32.mxu0 %v997
        %1165 = vmatmul.mubr.f32.gmra.mxu0 %v996
        %v1166 = vpop.f32.mrf.mxu0
        %v1167 = vadd.f32 %v1043, %v1166
        %v1168 = vpop.f32.mrf.mxu0
        %1169 = vmatprep.mubr.f32.mxu0 %v999
        %1170 = vmatmul.mubr.f32.gmra.mxu0 %v998
        %v1171 = vpop.f32.mrf.mxu0
        %v1172 = vadd.f32 %v1043, %v1171
        %v1173 = vpop.f32.mrf.mxu0
        %1174 = vmatprep.mubr.f32.mxu0 %v1001
        %1175 = vmatmul.mubr.f32.gmra.mxu0 %v1000
        %v1176 = vpop.f32.mrf.mxu0
        %v1177 = vadd.f32 %v1043, %v1176
        %v1178 = vpop.f32.mrf.mxu0
        %1179 = vmatprep.mubr.f32.mxu0 %v1003
        %1180 = vmatmul.mubr.f32.gmra.mxu0 %v1002
        %v1181 = vpop.f32.mrf.mxu0
        %v1182 = vadd.f32 %v1043, %v1181
        %v1183 = vpop.f32.mrf.mxu0
        %1184 = vmatprep.mubr.f32.mxu0 %v1005
        %1185 = vmatmul.mubr.f32.gmra.mxu0 %v1004
        %v1186 = vpop.f32.mrf.mxu0
        %v1187 = vadd.f32 %v1043, %v1186
        %v1188 = vpop.f32.mrf.mxu0
        %1189 = vmatprep.mubr.f32.mxu0 %v1007
        %1190 = vmatmul.mubr.f32.gmra.mxu0 %v1006
        %v1191 = vpop.f32.mrf.mxu0
        %v1192 = vadd.f32 %v1043, %v1191
        %v1193 = vpop.f32.mrf.mxu0
        %1194 = vmatprep.mubr.f32.mxu0 %v1009
        %1195 = vmatmul.mubr.f32.gmra.mxu0 %v1008
        %v1196 = vpop.f32.mrf.mxu0
        %v1197 = vadd.f32 %v1043, %v1196
        %v1198 = vpop.f32.mrf.mxu0
        %1199 = vmatprep.mubr.f32.mxu0 %v1011
        %1200 = vmatmul.mubr.f32.gmra.mxu0 %v1010
        %v1201 = vpop.f32.mrf.mxu0
        %v1202 = vadd.f32 %v1043, %v1201
        %v1203 = vpop.f32.mrf.mxu0
        %1204 = vmatprep.mubr.f32.mxu0 %v1013
        %1205 = vmatmul.mubr.f32.gmra.mxu0 %v1012
        %v1206 = vpop.f32.mrf.mxu0
        %v1207 = vadd.f32 %v1043, %v1206
        %v1208 = vpop.f32.mrf.mxu0
        %1209 = vmatprep.mubr.f32.mxu0 %v1015
        %1210 = vmatmul.mubr.f32.gmra.mxu0 %v1014
        %v1211 = vpop.f32.mrf.mxu0
        %v1212 = vadd.f32 %v1043, %v1211
        %v1213 = vpop.f32.mrf.mxu0
        %1214 = vmatprep.mubr.f32.mxu0 %v1017
        %1215 = vmatmul.mubr.f32.gmra.mxu0 %v1016
        %v1216 = vpop.f32.mrf.mxu0
        %v1217 = vadd.f32 %v1043, %v1216
        %v1218 = vpop.f32.mrf.mxu0
        %1219 = vmatprep.mubr.f32.mxu0 %v1019
        %1220 = vmatmul.mubr.f32.gmra.mxu0 %v1018
        %v1221 = vpop.f32.mrf.mxu0
        %v1222 = vadd.f32 %v1043, %v1221
        %v1223 = vpop.f32.mrf.mxu0
        %1224 = vmatprep.mubr.f32.mxu0 %v1021
        %1225 = vmatmul.mubr.f32.gmra.mxu0 %v1020
        %v1226 = vpop.f32.mrf.mxu0
        %v1227 = vadd.f32 %v1043, %v1226
        %v1228 = vpop.f32.mrf.mxu0
        %1229 = vmatprep.mubr.f32.mxu0 %v1023
        %1230 = vmatmul.mubr.f32.gmra.mxu0 %v1022
        %v1231 = vpop.f32.mrf.mxu0
        %v1232 = vadd.f32 %v1043, %v1231
        %v1233 = vpop.f32.mrf.mxu0
        %1234 = vmatprep.mubr.f32.mxu0 %v1025
        %1235 = vmatmul.mubr.f32.gmra.mxu0 %v1024
        %v1236 = vpop.f32.mrf.mxu0
        %v1237 = vadd.f32 %v1043, %v1236
        %v1238 = vpop.f32.mrf.mxu0
        %1239 = vmatprep.mubr.f32.mxu0 %v1027
        %1240 = vmatmul.mubr.f32.gmra.mxu0 %v1026
        %v1241 = vpop.f32.mrf.mxu0
        %v1242 = vadd.f32 %v1043, %v1241
        %v1243 = vpop.f32.mrf.mxu0
        %1244 = vmatprep.mubr.f32.mxu0 %v1029
        %1245 = vmatmul.mubr.f32.gmra.mxu0 %v1028
        %v1246 = vpop.f32.mrf.mxu0
        %v1247 = vadd.f32 %v1043, %v1246
        %v1248 = vpop.f32.mrf.mxu0
        %1249 = vmatprep.mubr.f32.mxu0 %v1031
        %1250 = vmatmul.mubr.f32.gmra.mxu0 %v1030
        %v1251 = vpop.f32.mrf.mxu0
        %v1252 = vadd.f32 %v1043, %v1251
        %v1253 = vpop.f32.mrf.mxu0
        %1254 = vmatprep.mubr.f32.mxu0 %v1033
        %1255 = vmatmul.mubr.f32.gmra.mxu0 %v1032
        %v1256 = vpop.f32.mrf.mxu0
        %v1257 = vadd.f32 %v1043, %v1256
        %v1258 = vpop.f32.mrf.mxu0
        %1259 = vmatprep.mubr.f32.mxu0 %v1035
        %1260 = vmatmul.mubr.f32.gmra.mxu0 %v1034
        %v1261 = vpop.f32.mrf.mxu0
        %v1262 = vadd.f32 %v1043, %v1261
        %v1263 = vpop.f32.mrf.mxu0
        %1264 = vmatprep.mubr.f32.mxu0 %v1037
        %1265 = vmatmul.mubr.f32.gmra.mxu0 %v1036
        %v1266 = vpop.f32.mrf.mxu0
        %v1267 = vadd.f32 %v1043, %v1266
        %v1268 = vpop.f32.mrf.mxu0
        %1269 = vdwg.mxu0
        %1270 = vst [vmem:[%s410] sm:$0xff] %v1112
        %1271 = vst [vmem:[%s410 + $0x8] sm:$0xff] %v1117
        %1272 = vst [vmem:[%s410 + $0x10] sm:$0xff] %v1122
        %1273 = vst [vmem:[%s410 + $0x18] sm:$0xff] %v1127
        %1274 = vst [vmem:[%s410 + $0x20] sm:$0xff] %v1132
        %1275 = vst [vmem:[%s410 + $0x28] sm:$0xff] %v1137
        %1276 = vst [vmem:[%s410 + $0x30] sm:$0xff] %v1142
        %1277 = vst [vmem:[%s410 + $0x38] sm:$0xff] %v1147
        %1278 = vst [vmem:[%s410 + $0x40] sm:$0xff] %v1152
        %1279 = vst [vmem:[%s410 + $0x48] sm:$0xff] %v1157
        %1280 = vst [vmem:[%s410 + $0x50] sm:$0xff] %v1162
        %1281 = vst [vmem:[%s410 + $0x58] sm:$0xff] %v1167
        %1282 = vst [vmem:[%s410 + $0x60] sm:$0xff] %v1172
        %1283 = vst [vmem:[%s410 + $0x68] sm:$0xff] %v1177
        %1284 = vst [vmem:[%s410 + $0x70] sm:$0xff] %v1182
        %1285 = vst [vmem:[%s410 + $0x78] sm:$0xff] %v1187
        %1286 = vst [vmem:[%s410 + $0x80] sm:$0xff] %v1192
        %1287 = vst [vmem:[%s410 + $0x88] sm:$0xff] %v1197
        %1288 = vst [vmem:[%s410 + $0x90] sm:$0xff] %v1202
        %1289 = vst [vmem:[%s410 + $0x98] sm:$0xff] %v1207
        %1290 = vst [vmem:[%s410 + $0xa0] sm:$0xff] %v1212
        %1291 = vst [vmem:[%s410 + $0xa8] sm:$0xff] %v1217
        %1292 = vst [vmem:[%s410 + $0xb0] sm:$0xff] %v1222
        %1293 = vst [vmem:[%s410 + $0xb8] sm:$0xff] %v1227
        %1294 = vst [vmem:[%s410 + $0xc0] sm:$0xff] %v1232
        %1295 = vst [vmem:[%s410 + $0xc8] sm:$0xff] %v1237
        %1296 = vst [vmem:[%s410 + $0xd0] sm:$0xff] %v1242
        %1297 = vst [vmem:[%s410 + $0xd8] sm:$0xff] %v1247
        %1298 = vst [vmem:[%s410 + $0xe0] sm:$0xff] %v1252
        %1299 = vst [vmem:[%s410 + $0xe8] sm:$0xff] %v1257
        %1300 = vst [vmem:[%s410 + $0xf0] sm:$0xff] %v1262
        %1301 = vst [vmem:[%s410 + $0xf8] sm:$0xff] %v1267
        %s1302 = sand.u32 %s232, 1
        %s1303 = scalar_lea.sflag [#allocation6], %s1302
        %s1304 = sand.u32 %s232, 1
        %s1305 = smul.addr %s1304, 256
        %s1306 = scalar_lea.vmem [#allocation13], %s1305
        // Predicated region
        $region77: #{tpu_custom_call.1} parent=55 // pred_check
          %p1307 = pneg %p242
        $region78: #{tpu_custom_call.1} parent=55 // pred_check_branch
          %1309 = sbr.rel (%p1307) target = $region80
        $region79: #{tpu_custom_call.1} parent=55 // pred_region
          %s1310 = smul.u32 32, %s30
          %s1312 = ssub.s32 4096, 4096
          %1313 = vsyncadd %s1303, %s1312
          %s1314 = smul.addr %s1310, 128
          %s1315 = scalar_lea.hbm %s9, %s1314
          %s1316 = sshll.u32 %s1306, 4
          %s1317 = int_to_ptr.vmem [resolvable:$true] %s1316
          %1322 = dma.vmem_to_hbm [thread:$0]  %s1317, 4096, %s1315, %s1303, 128, 128, 8
        $region80: #{tpu_custom_call.1} parent=55 // pred_fallthru
          _
      $region56: #{tpu_custom_call.1} parent=5 // pred_fallthru
        _
      %p1323 = scmp.le.s32.totalorder 2, %s25
      // Predicated region
      $region81: #{tpu_custom_call.1} parent=5 // pred_check
        %p1324 = pneg %p1323
      $region82: #{tpu_custom_call.1} parent=5 // pred_check_branch
        %1326 = sbr.rel (%p1324) target = $region84
      $region83: #{tpu_custom_call.1} parent=5 // pred_region
        %s1327 = ssub.s32 %s25, 2
        // Predicated region
        $region85: #{tpu_custom_call.1} parent=83 // pred_check
          %p1328 = pneg %p248
        $region86: #{tpu_custom_call.1} parent=83 // pred_check_branch
          %1330 = sbr.rel (%p1328) target = $region88
        $region87: #{tpu_custom_call.1} parent=83 // pred_region
          %s1331 = sand.u32 %s233, 1
          %s1332 = scalar_lea.sflag [#allocation6], %s1331
          %s1333 = sand.u32 %s233, 1
          %s1334 = smul.addr %s1333, 256
          %s1335 = scalar_lea.vmem [#allocation13], %s1334
          %1336 = dma.done %s1332, 4096
        $region88: #{tpu_custom_call.1} parent=83 // pred_fallthru
          _
      $region84: #{tpu_custom_call.1} parent=5 // pred_fallthru
        _
    $region6: #{tpu_custom_call.1} parent=1 // loop_footer
      %s29 = sadd.s32 1, %s25
    $region7: #{tpu_custom_call.1} parent=1 // loop_footer_branch
      %24 = sbr.rel target = $region3
    $region8: #{tpu_custom_call.1} parent=1 // loop_exit
      _
    %1337 = vsyncpa [#allocation5], 1
    %s1338 = scalar_lea.sflag [#allocation5], 1
    %1339 = vsyncpa %s1338, 1
    %1340 = vsyncpa [#allocation8], 1
    %1341 = vsyncpa [#allocation11], 1
    %1342 = vsyncpa [#allocation6], 1
    %s1343 = scalar_lea.sflag [#allocation6], 1
    %1344 = vsyncpa %s1343, 1

</llo_original>
